<compile_context>
chip_gen: v6e
topology: v6e:2x2x1
jax: 0.10.0
libtpu: 0.0.40
codegen_flags: <defaults>
</compile_context>

<pallas_src>
import numpy as np
import jax
import jax.numpy as jnp
from jax import lax
from jax.experimental import pallas as pl
from jax.experimental.pallas import tpu as pltpu


def _build_tap_masks(H, W):
    """(9, H*W) float32 in-bounds masks for the 3x3 spatial taps (flat-HW rolls)."""
    HW = H * W
    hh, ww = np.divmod(np.arange(HW), W)
    masks = np.ones((9, HW), np.float32)
    t = 0
    for dh in (-1, 0, 1):
        for dw in (-1, 0, 1):
            valid = (hh + dh >= 0) & (hh + dh < H) & (ww + dw >= 0) & (ww + dw < W)
            masks[t] = valid.astype(np.float32)
            t += 1
    return jnp.asarray(masks)


def _num_grid_steps(N):
    """One fat grid step on single-TC chips; one step per TensorCore on v7x."""
    kind = ""
    try:
        kind = jax.devices()[0].device_kind.lower()
    except Exception:
        pass
    if N >= 2 and N % 2 == 0 and ("v7" in kind or "7x" in kind):
        return 2
    return 1


def _make_frb_kernel(C, D, Nb, H, W):
    HW = H * W
    B = Nb * D        # rows per channel block on the sublane axis
    R = C * B         # total rows of the stacked slab
    taps = [(dh, dw) for dh in (-1, 0, 1) for dw in (-1, 0, 1)]

    def kernel(ws_ref, bs_ref, wt_ref, bt_ref, alpha_ref, mask_ref, x_ref, o_ref):
        # x_ref / o_ref: (R, HW) = (C * Nb * D, H*W) stacked, lane-dense slab (VMEM)
        # ws_ref (81,), bs_ref (3,), wt_ref (27,), bt_ref (3,), alpha_ref (1,): SMEM
        # mask_ref: (9, HW) float 0/1 boundary masks for the 3x3 taps (VMEM)

        # ---- PReLU (single shared parameter) -------------------------------
        x = x_ref[...]
        a = alpha_ref[0]
        y = jnp.where(x >= 0, x, a * x)                         # (R, HW)

        # ---- SptioConv: Conv3d(3,3,(1,3,3), pad (0,1,1)) --------------------
        # One lane roll of the whole stacked slab per tap (8 rolls total),
        # one mask multiply per tap; per-ci operands are aligned row blocks.
        sacc = [jnp.full((B, HW), bs_ref[co], dtype=jnp.float32) for co in range(C)]
        for t_idx, (dh, dw) in enumerate(taps):
            off = dh * W + dw
            if off == 0:
                t = y
            else:
                t = pltpu.roll(y, shift=(-off) % HW, axis=1)     # lane rotate
                t = t * mask_ref[t_idx:t_idx + 1, :]             # (1, HW) broadcast
            kh, kw = dh + 1, dw + 1
            for ci in range(C):
                t_ci = t[ci * B:(ci + 1) * B, :]
                for co in range(C):
                    w = ws_ref[((co * C + ci) * 3 + kh) * 3 + kw]
                    sacc[co] = sacc[co] + w * t_ci

        # ---- TemporalConv: Conv3d(3,3,(3,1,1), pad (1,0,0)) -----------------
        # +-1 depth shift in registers: 2 sublane rolls of the stacked spatial
        # result, masked at every d==0 / d==D-1 row (this also zeroes any wrap
        # across batch / channel block boundaries).  No VMEM scratch.
        s_all = jnp.concatenate(sacc, axis=0)                    # (R, HW)
        d_pos = lax.broadcasted_iota(jnp.int32, (R, 1), 0) % D
        s_prev = jnp.where(d_pos != 0,
                           pltpu.roll(s_all, shift=1, axis=0), 0.0)
        s_next = jnp.where(d_pos != D - 1,
                           pltpu.roll(s_all, shift=R - 1, axis=0), 0.0)

        tacc = [jnp.full((B, HW), bt_ref[co], dtype=jnp.float32) for co in range(C)]
        for ci in range(C):
            slabs = (s_prev[ci * B:(ci + 1) * B, :],
                     sacc[ci],                                   # kd=1: reuse register
                     s_next[ci * B:(ci + 1) * B, :])
            for co in range(C):
                base = (co * C + ci) * 3
                for kd in range(3):
                    tacc[co] = tacc[co] + wt_ref[base + kd] * slabs[kd]

        # single lane-dense, unmasked store of the whole output slab
        o_ref[...] = jnp.concatenate(tacc, axis=0)

    return kernel


def frb_block(x, alpha, ws, bs, wt, bt):
    N, C, D, H, W = x.shape
    assert C == 3
    HW = H * W
    steps = _num_grid_steps(N)
    Nb = N // steps
    R = C * Nb * D

    # Sublane-folded, lane-dense layout: (steps, C, Nb, D, HW) -> (steps, C*Nb*D, HW).
    # The transpose is tiny wrapper-side layout plumbing; reshapes are free.
    xt = (x.reshape(steps, Nb, C, D, HW)
           .transpose(0, 2, 1, 3, 4)
           .reshape(steps, R, HW))

    masks = _build_tap_masks(H, W)
    ws_flat = ws.reshape(-1)             # (3,3,1,3,3) -> (81,)
    wt_flat = wt.reshape(-1)             # (3,3,3,1,1) -> (27,)

    smem = pl.BlockSpec(memory_space=pltpu.MemorySpace.SMEM)
    grid_spec = pltpu.PrefetchScalarGridSpec(
        num_scalar_prefetch=0,
        grid=(steps,),
        in_specs=[smem, smem, smem, smem, smem,
                  pl.BlockSpec((9, HW), lambda b: (0, 0)),
                  pl.BlockSpec((None, R, HW), lambda b: (b, 0, 0))],
        out_specs=pl.BlockSpec((None, R, HW), lambda b: (b, 0, 0)),
    )
    out = pl.pallas_call(
        _make_frb_kernel(C, D, Nb, H, W),
        out_shape=jax.ShapeDtypeStruct((steps, R, HW), jnp.float32),
        grid_spec=grid_spec,
        compiler_params=pltpu.CompilerParams(
            dimension_semantics=("parallel",)),
    )(ws_flat, bs, wt_flat, bt, alpha, masks, xt)

    return (out.reshape(steps, C, Nb, D, HW)
               .transpose(0, 2, 1, 3, 4)
               .reshape(N, C, D, H, W))


def frb_ref(x, alpha, ws, bs, wt, bt):
    """Pure-JAX reference matching the PyTorch module."""
    y = jnp.where(x >= 0, x, alpha[0] * x)
    dn = lax.conv_dimension_numbers(x.shape, ws.shape,
                                    ('NCDHW', 'OIDHW', 'NCDHW'))
    s = lax.conv_general_dilated(y, ws, (1, 1, 1),
                                 ((0, 0), (1, 1), (1, 1)),
                                 dimension_numbers=dn)
    s = s + bs[None, :, None, None, None]
    t = lax.conv_general_dilated(s, wt, (1, 1, 1),
                                 ((1, 1), (0, 0), (0, 0)),
                                 dimension_numbers=dn)
    t = t + bt[None, :, None, None, None]
    return t


if __name__ == "__main__":
    key = jax.random.PRNGKey(0)
    k1, k2, k3, k4, k5 = jax.random.split(key, 5)

    N, C, D, H, W = 2, 3, 4, 16, 16   # small NCDHW video tensor

    # deterministic synthetic parameters (same shapes as the PyTorch module)
    alpha = jnp.array([0.25], dtype=jnp.float32)                      # PReLU
    ws = 0.1 * jax.random.normal(k1, (3, 3, 1, 3, 3), dtype=jnp.float32)
    bs = 0.1 * jax.random.normal(k2, (3,), dtype=jnp.float32)
    wt = 0.1 * jax.random.normal(k3, (3, 3, 3, 1, 1), dtype=jnp.float32)
    bt = 0.1 * jax.random.normal(k4, (3,), dtype=jnp.float32)

    x = jax.random.normal(k5, (N, C, D, H, W), dtype=jnp.float32)

    out = frb_block(x, alpha, ws, bs, wt, bt)
    out = jax.block_until_ready(out)

    ref = frb_ref(x, alpha, ws, bs, wt, bt)
    assert out.shape == (N, C, D, H, W)
    assert jnp.allclose(out, ref, atol=1e-4, rtol=1e-4), \
        f"max err {jnp.max(jnp.abs(out - ref))}"

    print("KERNEL_OK")
</pallas_src>

<mosaic_0001>
module attributes {stable_mosaic.version = 11 : i64} {
  func.func @kernel(%arg0: i32, %arg1: memref<81xf32, #tpu.memory_space<smem>>, %arg2: memref<3xf32, #tpu.memory_space<smem>>, %arg3: memref<27xf32, #tpu.memory_space<smem>>, %arg4: memref<3xf32, #tpu.memory_space<smem>>, %arg5: memref<1xf32, #tpu.memory_space<smem>>, %arg6: memref<9x256xf32, #tpu.memory_space<vmem>>, %arg7: memref<1x24x256xf32, #tpu.memory_space<vmem>>, %arg8: memref<1x24x256xf32, #tpu.memory_space<vmem>>) attributes {dimension_semantics = [#tpu.dimension_semantics<parallel>], iteration_bounds = array<i64: 1>, scalar_prefetch = 0 : i64, scratch_operands = 0 : i64, tpu.core_type = #tpu.core_type<tc>, window_params = [{transform_indices = @transform_0, window_bounds = array<i64: 81>}, {transform_indices = @transform_1, window_bounds = array<i64: 3>}, {transform_indices = @transform_2, window_bounds = array<i64: 27>}, {transform_indices = @transform_3, window_bounds = array<i64: 3>}, {transform_indices = @transform_4, window_bounds = array<i64: 1>}, {pipeline_mode = #tpu.pipeline_mode<synchronous>, transform_indices = @transform_5, window_bounds = array<i64: 9, 256>}, {transform_indices = @transform_6, window_bounds = array<i64: 1, 24, 256>}, {transform_indices = @transform_7, window_bounds = array<i64: 1, 24, 256>}]} {
    %c0 = arith.constant 0 : index
    %c0_0 = arith.constant 0 : index
    %c0_1 = arith.constant 0 : index
    %0 = vector.load %arg7[%c0, %c0_0, %c0_1] : memref<1x24x256xf32, #tpu.memory_space<vmem>>, vector<1x24x256xf32>
    %1 = vector.shape_cast %0 : vector<1x24x256xf32> to vector<24x256xf32>
    %c0_2 = arith.constant 0 : index
    %2 = memref.load %arg5[%c0_2] : memref<1xf32, #tpu.memory_space<smem>>
    %cst = arith.constant 0.000000e+00 : f32
    %3 = vector.broadcast %cst : f32 to vector<24x256xf32>
    %4 = arith.cmpf oge, %1, %3 : vector<24x256xf32>
    %5 = vector.broadcast %2 : f32 to vector<24x256xf32>
    %6 = arith.mulf %5, %1 : vector<24x256xf32>
    %7 = arith.select %4, %1, %6 : vector<24x256xi1>, vector<24x256xf32>
    %c0_3 = arith.constant 0 : index
    %8 = memref.load %arg2[%c0_3] : memref<3xf32, #tpu.memory_space<smem>>
    %9 = vector.broadcast %8 : f32 to vector<8x256xf32>
    %c1 = arith.constant 1 : index
    %10 = memref.load %arg2[%c1] : memref<3xf32, #tpu.memory_space<smem>>
    %11 = vector.broadcast %10 : f32 to vector<8x256xf32>
    %c2 = arith.constant 2 : index
    %12 = memref.load %arg2[%c2] : memref<3xf32, #tpu.memory_space<smem>>
    %13 = vector.broadcast %12 : f32 to vector<8x256xf32>
    %c17_i32 = arith.constant 17 : i32
    %14 = tpu.dynamic_rotate %7 by %c17_i32 dim 1 : vector<24x256xf32>, i32 -> vector<24x256xf32>
    %c0_4 = arith.constant 0 : index
    %c0_5 = arith.constant 0 : index
    %15 = vector.load %arg6[%c0_4, %c0_5] : memref<9x256xf32, #tpu.memory_space<vmem>>, vector<1x256xf32>
    %16 = vector.broadcast %15 : vector<1x256xf32> to vector<24x256xf32>
    %17 = arith.mulf %14, %16 : vector<24x256xf32>
    %18 = vector.extract_strided_slice %17 {offsets = [0, 0], sizes = [8, 256], strides = [1, 1]} : vector<24x256xf32> to vector<8x256xf32>
    %c0_6 = arith.constant 0 : index
    %19 = memref.load %arg1[%c0_6] : memref<81xf32, #tpu.memory_space<smem>>
    %20 = vector.broadcast %19 : f32 to vector<8x256xf32>
    %21 = arith.mulf %20, %18 : vector<8x256xf32>
    %22 = arith.addf %9, %21 : vector<8x256xf32>
    %c27 = arith.constant 27 : index
    %23 = memref.load %arg1[%c27] : memref<81xf32, #tpu.memory_space<smem>>
    %24 = vector.broadcast %23 : f32 to vector<8x256xf32>
    %25 = arith.mulf %24, %18 : vector<8x256xf32>
    %26 = arith.addf %11, %25 : vector<8x256xf32>
    %c54 = arith.constant 54 : index
    %27 = memref.load %arg1[%c54] : memref<81xf32, #tpu.memory_space<smem>>
    %28 = vector.broadcast %27 : f32 to vector<8x256xf32>
    %29 = arith.mulf %28, %18 : vector<8x256xf32>
    %30 = arith.addf %13, %29 : vector<8x256xf32>
    %31 = vector.extract_strided_slice %17 {offsets = [8, 0], sizes = [8, 256], strides = [1, 1]} : vector<24x256xf32> to vector<8x256xf32>
    %c9 = arith.constant 9 : index
    %32 = memref.load %arg1[%c9] : memref<81xf32, #tpu.memory_space<smem>>
    %33 = vector.broadcast %32 : f32 to vector<8x256xf32>
    %34 = arith.mulf %33, %31 : vector<8x256xf32>
    %35 = arith.addf %22, %34 : vector<8x256xf32>
    %c36 = arith.constant 36 : index
    %36 = memref.load %arg1[%c36] : memref<81xf32, #tpu.memory_space<smem>>
    %37 = vector.broadcast %36 : f32 to vector<8x256xf32>
    %38 = arith.mulf %37, %31 : vector<8x256xf32>
    %39 = arith.addf %26, %38 : vector<8x256xf32>
    %c63 = arith.constant 63 : index
    %40 = memref.load %arg1[%c63] : memref<81xf32, #tpu.memory_space<smem>>
    %41 = vector.broadcast %40 : f32 to vector<8x256xf32>
    %42 = arith.mulf %41, %31 : vector<8x256xf32>
    %43 = arith.addf %30, %42 : vector<8x256xf32>
    %44 = vector.extract_strided_slice %17 {offsets = [16, 0], sizes = [8, 256], strides = [1, 1]} : vector<24x256xf32> to vector<8x256xf32>
    %c18 = arith.constant 18 : index
    %45 = memref.load %arg1[%c18] : memref<81xf32, #tpu.memory_space<smem>>
    %46 = vector.broadcast %45 : f32 to vector<8x256xf32>
    %47 = arith.mulf %46, %44 : vector<8x256xf32>
    %48 = arith.addf %35, %47 : vector<8x256xf32>
    %c45 = arith.constant 45 : index
    %49 = memref.load %arg1[%c45] : memref<81xf32, #tpu.memory_space<smem>>
    %50 = vector.broadcast %49 : f32 to vector<8x256xf32>
    %51 = arith.mulf %50, %44 : vector<8x256xf32>
    %52 = arith.addf %39, %51 : vector<8x256xf32>
    %c72 = arith.constant 72 : index
    %53 = memref.load %arg1[%c72] : memref<81xf32, #tpu.memory_space<smem>>
    %54 = vector.broadcast %53 : f32 to vector<8x256xf32>
    %55 = arith.mulf %54, %44 : vector<8x256xf32>
    %56 = arith.addf %43, %55 : vector<8x256xf32>
    %c16_i32 = arith.constant 16 : i32
    %57 = tpu.dynamic_rotate %7 by %c16_i32 dim 1 : vector<24x256xf32>, i32 -> vector<24x256xf32>
    %c1_7 = arith.constant 1 : index
    %c0_8 = arith.constant 0 : index
    %58 = vector.load %arg6[%c1_7, %c0_8] : memref<9x256xf32, #tpu.memory_space<vmem>>, vector<1x256xf32>
    %59 = vector.broadcast %58 : vector<1x256xf32> to vector<24x256xf32>
    %60 = arith.mulf %57, %59 : vector<24x256xf32>
    %61 = vector.extract_strided_slice %60 {offsets = [0, 0], sizes = [8, 256], strides = [1, 1]} : vector<24x256xf32> to vector<8x256xf32>
    %c1_9 = arith.constant 1 : index
    %62 = memref.load %arg1[%c1_9] : memref<81xf32, #tpu.memory_space<smem>>
    %63 = vector.broadcast %62 : f32 to vector<8x256xf32>
    %64 = arith.mulf %63, %61 : vector<8x256xf32>
    %65 = arith.addf %48, %64 : vector<8x256xf32>
    %c28 = arith.constant 28 : index
    %66 = memref.load %arg1[%c28] : memref<81xf32, #tpu.memory_space<smem>>
    %67 = vector.broadcast %66 : f32 to vector<8x256xf32>
    %68 = arith.mulf %67, %61 : vector<8x256xf32>
    %69 = arith.addf %52, %68 : vector<8x256xf32>
    %c55 = arith.constant 55 : index
    %70 = memref.load %arg1[%c55] : memref<81xf32, #tpu.memory_space<smem>>
    %71 = vector.broadcast %70 : f32 to vector<8x256xf32>
    %72 = arith.mulf %71, %61 : vector<8x256xf32>
    %73 = arith.addf %56, %72 : vector<8x256xf32>
    %74 = vector.extract_strided_slice %60 {offsets = [8, 0], sizes = [8, 256], strides = [1, 1]} : vector<24x256xf32> to vector<8x256xf32>
    %c10 = arith.constant 10 : index
    %75 = memref.load %arg1[%c10] : memref<81xf32, #tpu.memory_space<smem>>
    %76 = vector.broadcast %75 : f32 to vector<8x256xf32>
    %77 = arith.mulf %76, %74 : vector<8x256xf32>
    %78 = arith.addf %65, %77 : vector<8x256xf32>
    %c37 = arith.constant 37 : index
    %79 = memref.load %arg1[%c37] : memref<81xf32, #tpu.memory_space<smem>>
    %80 = vector.broadcast %79 : f32 to vector<8x256xf32>
    %81 = arith.mulf %80, %74 : vector<8x256xf32>
    %82 = arith.addf %69, %81 : vector<8x256xf32>
    %c64 = arith.constant 64 : index
    %83 = memref.load %arg1[%c64] : memref<81xf32, #tpu.memory_space<smem>>
    %84 = vector.broadcast %83 : f32 to vector<8x256xf32>
    %85 = arith.mulf %84, %74 : vector<8x256xf32>
    %86 = arith.addf %73, %85 : vector<8x256xf32>
    %87 = vector.extract_strided_slice %60 {offsets = [16, 0], sizes = [8, 256], strides = [1, 1]} : vector<24x256xf32> to vector<8x256xf32>
    %c19 = arith.constant 19 : index
    %88 = memref.load %arg1[%c19] : memref<81xf32, #tpu.memory_space<smem>>
    %89 = vector.broadcast %88 : f32 to vector<8x256xf32>
    %90 = arith.mulf %89, %87 : vector<8x256xf32>
    %91 = arith.addf %78, %90 : vector<8x256xf32>
    %c46 = arith.constant 46 : index
    %92 = memref.load %arg1[%c46] : memref<81xf32, #tpu.memory_space<smem>>
    %93 = vector.broadcast %92 : f32 to vector<8x256xf32>
    %94 = arith.mulf %93, %87 : vector<8x256xf32>
    %95 = arith.addf %82, %94 : vector<8x256xf32>
    %c73 = arith.constant 73 : index
    %96 = memref.load %arg1[%c73] : memref<81xf32, #tpu.memory_space<smem>>
    %97 = vector.broadcast %96 : f32 to vector<8x256xf32>
    %98 = arith.mulf %97, %87 : vector<8x256xf32>
    %99 = arith.addf %86, %98 : vector<8x256xf32>
    %c15_i32 = arith.constant 15 : i32
    %100 = tpu.dynamic_rotate %7 by %c15_i32 dim 1 : vector<24x256xf32>, i32 -> vector<24x256xf32>
    %c2_10 = arith.constant 2 : index
    %c0_11 = arith.constant 0 : index
    %101 = vector.load %arg6[%c2_10, %c0_11] : memref<9x256xf32, #tpu.memory_space<vmem>>, vector<1x256xf32>
    %102 = vector.broadcast %101 : vector<1x256xf32> to vector<24x256xf32>
    %103 = arith.mulf %100, %102 : vector<24x256xf32>
    %104 = vector.extract_strided_slice %103 {offsets = [0, 0], sizes = [8, 256], strides = [1, 1]} : vector<24x256xf32> to vector<8x256xf32>
    %c2_12 = arith.constant 2 : index
    %105 = memref.load %arg1[%c2_12] : memref<81xf32, #tpu.memory_space<smem>>
    %106 = vector.broadcast %105 : f32 to vector<8x256xf32>
    %107 = arith.mulf %106, %104 : vector<8x256xf32>
    %108 = arith.addf %91, %107 : vector<8x256xf32>
    %c29 = arith.constant 29 : index
    %109 = memref.load %arg1[%c29] : memref<81xf32, #tpu.memory_space<smem>>
    %110 = vector.broadcast %109 : f32 to vector<8x256xf32>
    %111 = arith.mulf %110, %104 : vector<8x256xf32>
    %112 = arith.addf %95, %111 : vector<8x256xf32>
    %c56 = arith.constant 56 : index
    %113 = memref.load %arg1[%c56] : memref<81xf32, #tpu.memory_space<smem>>
    %114 = vector.broadcast %113 : f32 to vector<8x256xf32>
    %115 = arith.mulf %114, %104 : vector<8x256xf32>
    %116 = arith.addf %99, %115 : vector<8x256xf32>
    %117 = vector.extract_strided_slice %103 {offsets = [8, 0], sizes = [8, 256], strides = [1, 1]} : vector<24x256xf32> to vector<8x256xf32>
    %c11 = arith.constant 11 : index
    %118 = memref.load %arg1[%c11] : memref<81xf32, #tpu.memory_space<smem>>
    %119 = vector.broadcast %118 : f32 to vector<8x256xf32>
    %120 = arith.mulf %119, %117 : vector<8x256xf32>
    %121 = arith.addf %108, %120 : vector<8x256xf32>
    %c38 = arith.constant 38 : index
    %122 = memref.load %arg1[%c38] : memref<81xf32, #tpu.memory_space<smem>>
    %123 = vector.broadcast %122 : f32 to vector<8x256xf32>
    %124 = arith.mulf %123, %117 : vector<8x256xf32>
    %125 = arith.addf %112, %124 : vector<8x256xf32>
    %c65 = arith.constant 65 : index
    %126 = memref.load %arg1[%c65] : memref<81xf32, #tpu.memory_space<smem>>
    %127 = vector.broadcast %126 : f32 to vector<8x256xf32>
    %128 = arith.mulf %127, %117 : vector<8x256xf32>
    %129 = arith.addf %116, %128 : vector<8x256xf32>
    %130 = vector.extract_strided_slice %103 {offsets = [16, 0], sizes = [8, 256], strides = [1, 1]} : vector<24x256xf32> to vector<8x256xf32>
    %c20 = arith.constant 20 : index
    %131 = memref.load %arg1[%c20] : memref<81xf32, #tpu.memory_space<smem>>
    %132 = vector.broadcast %131 : f32 to vector<8x256xf32>
    %133 = arith.mulf %132, %130 : vector<8x256xf32>
    %134 = arith.addf %121, %133 : vector<8x256xf32>
    %c47 = arith.constant 47 : index
    %135 = memref.load %arg1[%c47] : memref<81xf32, #tpu.memory_space<smem>>
    %136 = vector.broadcast %135 : f32 to vector<8x256xf32>
    %137 = arith.mulf %136, %130 : vector<8x256xf32>
    %138 = arith.addf %125, %137 : vector<8x256xf32>
    %c74 = arith.constant 74 : index
    %139 = memref.load %arg1[%c74] : memref<81xf32, #tpu.memory_space<smem>>
    %140 = vector.broadcast %139 : f32 to vector<8x256xf32>
    %141 = arith.mulf %140, %130 : vector<8x256xf32>
    %142 = arith.addf %129, %141 : vector<8x256xf32>
    %c1_i32 = arith.constant 1 : i32
    %143 = tpu.dynamic_rotate %7 by %c1_i32 dim 1 : vector<24x256xf32>, i32 -> vector<24x256xf32>
    %c3 = arith.constant 3 : index
    %c0_13 = arith.constant 0 : index
    %144 = vector.load %arg6[%c3, %c0_13] : memref<9x256xf32, #tpu.memory_space<vmem>>, vector<1x256xf32>
    %145 = vector.broadcast %144 : vector<1x256xf32> to vector<24x256xf32>
    %146 = arith.mulf %143, %145 : vector<24x256xf32>
    %147 = vector.extract_strided_slice %146 {offsets = [0, 0], sizes = [8, 256], strides = [1, 1]} : vector<24x256xf32> to vector<8x256xf32>
    %c3_14 = arith.constant 3 : index
    %148 = memref.load %arg1[%c3_14] : memref<81xf32, #tpu.memory_space<smem>>
    %149 = vector.broadcast %148 : f32 to vector<8x256xf32>
    %150 = arith.mulf %149, %147 : vector<8x256xf32>
    %151 = arith.addf %134, %150 : vector<8x256xf32>
    %c30 = arith.constant 30 : index
    %152 = memref.load %arg1[%c30] : memref<81xf32, #tpu.memory_space<smem>>
    %153 = vector.broadcast %152 : f32 to vector<8x256xf32>
    %154 = arith.mulf %153, %147 : vector<8x256xf32>
    %155 = arith.addf %138, %154 : vector<8x256xf32>
    %c57 = arith.constant 57 : index
    %156 = memref.load %arg1[%c57] : memref<81xf32, #tpu.memory_space<smem>>
    %157 = vector.broadcast %156 : f32 to vector<8x256xf32>
    %158 = arith.mulf %157, %147 : vector<8x256xf32>
    %159 = arith.addf %142, %158 : vector<8x256xf32>
    %160 = vector.extract_strided_slice %146 {offsets = [8, 0], sizes = [8, 256], strides = [1, 1]} : vector<24x256xf32> to vector<8x256xf32>
    %c12 = arith.constant 12 : index
    %161 = memref.load %arg1[%c12] : memref<81xf32, #tpu.memory_space<smem>>
    %162 = vector.broadcast %161 : f32 to vector<8x256xf32>
    %163 = arith.mulf %162, %160 : vector<8x256xf32>
    %164 = arith.addf %151, %163 : vector<8x256xf32>
    %c39 = arith.constant 39 : index
    %165 = memref.load %arg1[%c39] : memref<81xf32, #tpu.memory_space<smem>>
    %166 = vector.broadcast %165 : f32 to vector<8x256xf32>
    %167 = arith.mulf %166, %160 : vector<8x256xf32>
    %168 = arith.addf %155, %167 : vector<8x256xf32>
    %c66 = arith.constant 66 : index
    %169 = memref.load %arg1[%c66] : memref<81xf32, #tpu.memory_space<smem>>
    %170 = vector.broadcast %169 : f32 to vector<8x256xf32>
    %171 = arith.mulf %170, %160 : vector<8x256xf32>
    %172 = arith.addf %159, %171 : vector<8x256xf32>
    %173 = vector.extract_strided_slice %146 {offsets = [16, 0], sizes = [8, 256], strides = [1, 1]} : vector<24x256xf32> to vector<8x256xf32>
    %c21 = arith.constant 21 : index
    %174 = memref.load %arg1[%c21] : memref<81xf32, #tpu.memory_space<smem>>
    %175 = vector.broadcast %174 : f32 to vector<8x256xf32>
    %176 = arith.mulf %175, %173 : vector<8x256xf32>
    %177 = arith.addf %164, %176 : vector<8x256xf32>
    %c48 = arith.constant 48 : index
    %178 = memref.load %arg1[%c48] : memref<81xf32, #tpu.memory_space<smem>>
    %179 = vector.broadcast %178 : f32 to vector<8x256xf32>
    %180 = arith.mulf %179, %173 : vector<8x256xf32>
    %181 = arith.addf %168, %180 : vector<8x256xf32>
    %c75 = arith.constant 75 : index
    %182 = memref.load %arg1[%c75] : memref<81xf32, #tpu.memory_space<smem>>
    %183 = vector.broadcast %182 : f32 to vector<8x256xf32>
    %184 = arith.mulf %183, %173 : vector<8x256xf32>
    %185 = arith.addf %172, %184 : vector<8x256xf32>
    %186 = vector.extract_strided_slice %7 {offsets = [0, 0], sizes = [8, 256], strides = [1, 1]} : vector<24x256xf32> to vector<8x256xf32>
    %c4 = arith.constant 4 : index
    %187 = memref.load %arg1[%c4] : memref<81xf32, #tpu.memory_space<smem>>
    %188 = vector.broadcast %187 : f32 to vector<8x256xf32>
    %189 = arith.mulf %188, %186 : vector<8x256xf32>
    %190 = arith.addf %177, %189 : vector<8x256xf32>
    %c31 = arith.constant 31 : index
    %191 = memref.load %arg1[%c31] : memref<81xf32, #tpu.memory_space<smem>>
    %192 = vector.broadcast %191 : f32 to vector<8x256xf32>
    %193 = arith.mulf %192, %186 : vector<8x256xf32>
    %194 = arith.addf %181, %193 : vector<8x256xf32>
    %c58 = arith.constant 58 : index
    %195 = memref.load %arg1[%c58] : memref<81xf32, #tpu.memory_space<smem>>
    %196 = vector.broadcast %195 : f32 to vector<8x256xf32>
    %197 = arith.mulf %196, %186 : vector<8x256xf32>
    %198 = arith.addf %185, %197 : vector<8x256xf32>
    %199 = vector.extract_strided_slice %7 {offsets = [8, 0], sizes = [8, 256], strides = [1, 1]} : vector<24x256xf32> to vector<8x256xf32>
    %c13 = arith.constant 13 : index
    %200 = memref.load %arg1[%c13] : memref<81xf32, #tpu.memory_space<smem>>
    %201 = vector.broadcast %200 : f32 to vector<8x256xf32>
    %202 = arith.mulf %201, %199 : vector<8x256xf32>
    %203 = arith.addf %190, %202 : vector<8x256xf32>
    %c40 = arith.constant 40 : index
    %204 = memref.load %arg1[%c40] : memref<81xf32, #tpu.memory_space<smem>>
    %205 = vector.broadcast %204 : f32 to vector<8x256xf32>
    %206 = arith.mulf %205, %199 : vector<8x256xf32>
    %207 = arith.addf %194, %206 : vector<8x256xf32>
    %c67 = arith.constant 67 : index
    %208 = memref.load %arg1[%c67] : memref<81xf32, #tpu.memory_space<smem>>
    %209 = vector.broadcast %208 : f32 to vector<8x256xf32>
    %210 = arith.mulf %209, %199 : vector<8x256xf32>
    %211 = arith.addf %198, %210 : vector<8x256xf32>
    %212 = vector.extract_strided_slice %7 {offsets = [16, 0], sizes = [8, 256], strides = [1, 1]} : vector<24x256xf32> to vector<8x256xf32>
    %c22 = arith.constant 22 : index
    %213 = memref.load %arg1[%c22] : memref<81xf32, #tpu.memory_space<smem>>
    %214 = vector.broadcast %213 : f32 to vector<8x256xf32>
    %215 = arith.mulf %214, %212 : vector<8x256xf32>
    %216 = arith.addf %203, %215 : vector<8x256xf32>
    %c49 = arith.constant 49 : index
    %217 = memref.load %arg1[%c49] : memref<81xf32, #tpu.memory_space<smem>>
    %218 = vector.broadcast %217 : f32 to vector<8x256xf32>
    %219 = arith.mulf %218, %212 : vector<8x256xf32>
    %220 = arith.addf %207, %219 : vector<8x256xf32>
    %c76 = arith.constant 76 : index
    %221 = memref.load %arg1[%c76] : memref<81xf32, #tpu.memory_space<smem>>
    %222 = vector.broadcast %221 : f32 to vector<8x256xf32>
    %223 = arith.mulf %222, %212 : vector<8x256xf32>
    %224 = arith.addf %211, %223 : vector<8x256xf32>
    %c255_i32 = arith.constant 255 : i32
    %225 = tpu.dynamic_rotate %7 by %c255_i32 dim 1 : vector<24x256xf32>, i32 -> vector<24x256xf32>
    %c5 = arith.constant 5 : index
    %c0_15 = arith.constant 0 : index
    %226 = vector.load %arg6[%c5, %c0_15] : memref<9x256xf32, #tpu.memory_space<vmem>>, vector<1x256xf32>
    %227 = vector.broadcast %226 : vector<1x256xf32> to vector<24x256xf32>
    %228 = arith.mulf %225, %227 : vector<24x256xf32>
    %229 = vector.extract_strided_slice %228 {offsets = [0, 0], sizes = [8, 256], strides = [1, 1]} : vector<24x256xf32> to vector<8x256xf32>
    %c5_16 = arith.constant 5 : index
    %230 = memref.load %arg1[%c5_16] : memref<81xf32, #tpu.memory_space<smem>>
    %231 = vector.broadcast %230 : f32 to vector<8x256xf32>
    %232 = arith.mulf %231, %229 : vector<8x256xf32>
    %233 = arith.addf %216, %232 : vector<8x256xf32>
    %c32 = arith.constant 32 : index
    %234 = memref.load %arg1[%c32] : memref<81xf32, #tpu.memory_space<smem>>
    %235 = vector.broadcast %234 : f32 to vector<8x256xf32>
    %236 = arith.mulf %235, %229 : vector<8x256xf32>
    %237 = arith.addf %220, %236 : vector<8x256xf32>
    %c59 = arith.constant 59 : index
    %238 = memref.load %arg1[%c59] : memref<81xf32, #tpu.memory_space<smem>>
    %239 = vector.broadcast %238 : f32 to vector<8x256xf32>
    %240 = arith.mulf %239, %229 : vector<8x256xf32>
    %241 = arith.addf %224, %240 : vector<8x256xf32>
    %242 = vector.extract_strided_slice %228 {offsets = [8, 0], sizes = [8, 256], strides = [1, 1]} : vector<24x256xf32> to vector<8x256xf32>
    %c14 = arith.constant 14 : index
    %243 = memref.load %arg1[%c14] : memref<81xf32, #tpu.memory_space<smem>>
    %244 = vector.broadcast %243 : f32 to vector<8x256xf32>
    %245 = arith.mulf %244, %242 : vector<8x256xf32>
    %246 = arith.addf %233, %245 : vector<8x256xf32>
    %c41 = arith.constant 41 : index
    %247 = memref.load %arg1[%c41] : memref<81xf32, #tpu.memory_space<smem>>
    %248 = vector.broadcast %247 : f32 to vector<8x256xf32>
    %249 = arith.mulf %248, %242 : vector<8x256xf32>
    %250 = arith.addf %237, %249 : vector<8x256xf32>
    %c68 = arith.constant 68 : index
    %251 = memref.load %arg1[%c68] : memref<81xf32, #tpu.memory_space<smem>>
    %252 = vector.broadcast %251 : f32 to vector<8x256xf32>
    %253 = arith.mulf %252, %242 : vector<8x256xf32>
    %254 = arith.addf %241, %253 : vector<8x256xf32>
    %255 = vector.extract_strided_slice %228 {offsets = [16, 0], sizes = [8, 256], strides = [1, 1]} : vector<24x256xf32> to vector<8x256xf32>
    %c23 = arith.constant 23 : index
    %256 = memref.load %arg1[%c23] : memref<81xf32, #tpu.memory_space<smem>>
    %257 = vector.broadcast %256 : f32 to vector<8x256xf32>
    %258 = arith.mulf %257, %255 : vector<8x256xf32>
    %259 = arith.addf %246, %258 : vector<8x256xf32>
    %c50 = arith.constant 50 : index
    %260 = memref.load %arg1[%c50] : memref<81xf32, #tpu.memory_space<smem>>
    %261 = vector.broadcast %260 : f32 to vector<8x256xf32>
    %262 = arith.mulf %261, %255 : vector<8x256xf32>
    %263 = arith.addf %250, %262 : vector<8x256xf32>
    %c77 = arith.constant 77 : index
    %264 = memref.load %arg1[%c77] : memref<81xf32, #tpu.memory_space<smem>>
    %265 = vector.broadcast %264 : f32 to vector<8x256xf32>
    %266 = arith.mulf %265, %255 : vector<8x256xf32>
    %267 = arith.addf %254, %266 : vector<8x256xf32>
    %c241_i32 = arith.constant 241 : i32
    %268 = tpu.dynamic_rotate %7 by %c241_i32 dim 1 : vector<24x256xf32>, i32 -> vector<24x256xf32>
    %c6 = arith.constant 6 : index
    %c0_17 = arith.constant 0 : index
    %269 = vector.load %arg6[%c6, %c0_17] : memref<9x256xf32, #tpu.memory_space<vmem>>, vector<1x256xf32>
    %270 = vector.broadcast %269 : vector<1x256xf32> to vector<24x256xf32>
    %271 = arith.mulf %268, %270 : vector<24x256xf32>
    %272 = vector.extract_strided_slice %271 {offsets = [0, 0], sizes = [8, 256], strides = [1, 1]} : vector<24x256xf32> to vector<8x256xf32>
    %c6_18 = arith.constant 6 : index
    %273 = memref.load %arg1[%c6_18] : memref<81xf32, #tpu.memory_space<smem>>
    %274 = vector.broadcast %273 : f32 to vector<8x256xf32>
    %275 = arith.mulf %274, %272 : vector<8x256xf32>
    %276 = arith.addf %259, %275 : vector<8x256xf32>
    %c33 = arith.constant 33 : index
    %277 = memref.load %arg1[%c33] : memref<81xf32, #tpu.memory_space<smem>>
    %278 = vector.broadcast %277 : f32 to vector<8x256xf32>
    %279 = arith.mulf %278, %272 : vector<8x256xf32>
    %280 = arith.addf %263, %279 : vector<8x256xf32>
    %c60 = arith.constant 60 : index
    %281 = memref.load %arg1[%c60] : memref<81xf32, #tpu.memory_space<smem>>
    %282 = vector.broadcast %281 : f32 to vector<8x256xf32>
    %283 = arith.mulf %282, %272 : vector<8x256xf32>
    %284 = arith.addf %267, %283 : vector<8x256xf32>
    %285 = vector.extract_strided_slice %271 {offsets = [8, 0], sizes = [8, 256], strides = [1, 1]} : vector<24x256xf32> to vector<8x256xf32>
    %c15 = arith.constant 15 : index
    %286 = memref.load %arg1[%c15] : memref<81xf32, #tpu.memory_space<smem>>
    %287 = vector.broadcast %286 : f32 to vector<8x256xf32>
    %288 = arith.mulf %287, %285 : vector<8x256xf32>
    %289 = arith.addf %276, %288 : vector<8x256xf32>
    %c42 = arith.constant 42 : index
    %290 = memref.load %arg1[%c42] : memref<81xf32, #tpu.memory_space<smem>>
    %291 = vector.broadcast %290 : f32 to vector<8x256xf32>
    %292 = arith.mulf %291, %285 : vector<8x256xf32>
    %293 = arith.addf %280, %292 : vector<8x256xf32>
    %c69 = arith.constant 69 : index
    %294 = memref.load %arg1[%c69] : memref<81xf32, #tpu.memory_space<smem>>
    %295 = vector.broadcast %294 : f32 to vector<8x256xf32>
    %296 = arith.mulf %295, %285 : vector<8x256xf32>
    %297 = arith.addf %284, %296 : vector<8x256xf32>
    %298 = vector.extract_strided_slice %271 {offsets = [16, 0], sizes = [8, 256], strides = [1, 1]} : vector<24x256xf32> to vector<8x256xf32>
    %c24 = arith.constant 24 : index
    %299 = memref.load %arg1[%c24] : memref<81xf32, #tpu.memory_space<smem>>
    %300 = vector.broadcast %299 : f32 to vector<8x256xf32>
    %301 = arith.mulf %300, %298 : vector<8x256xf32>
    %302 = arith.addf %289, %301 : vector<8x256xf32>
    %c51 = arith.constant 51 : index
    %303 = memref.load %arg1[%c51] : memref<81xf32, #tpu.memory_space<smem>>
    %304 = vector.broadcast %303 : f32 to vector<8x256xf32>
    %305 = arith.mulf %304, %298 : vector<8x256xf32>
    %306 = arith.addf %293, %305 : vector<8x256xf32>
    %c78 = arith.constant 78 : index
    %307 = memref.load %arg1[%c78] : memref<81xf32, #tpu.memory_space<smem>>
    %308 = vector.broadcast %307 : f32 to vector<8x256xf32>
    %309 = arith.mulf %308, %298 : vector<8x256xf32>
    %310 = arith.addf %297, %309 : vector<8x256xf32>
    %c240_i32 = arith.constant 240 : i32
    %311 = tpu.dynamic_rotate %7 by %c240_i32 dim 1 : vector<24x256xf32>, i32 -> vector<24x256xf32>
    %c7 = arith.constant 7 : index
    %c0_19 = arith.constant 0 : index
    %312 = vector.load %arg6[%c7, %c0_19] : memref<9x256xf32, #tpu.memory_space<vmem>>, vector<1x256xf32>
    %313 = vector.broadcast %312 : vector<1x256xf32> to vector<24x256xf32>
    %314 = arith.mulf %311, %313 : vector<24x256xf32>
    %315 = vector.extract_strided_slice %314 {offsets = [0, 0], sizes = [8, 256], strides = [1, 1]} : vector<24x256xf32> to vector<8x256xf32>
    %c7_20 = arith.constant 7 : index
    %316 = memref.load %arg1[%c7_20] : memref<81xf32, #tpu.memory_space<smem>>
    %317 = vector.broadcast %316 : f32 to vector<8x256xf32>
    %318 = arith.mulf %317, %315 : vector<8x256xf32>
    %319 = arith.addf %302, %318 : vector<8x256xf32>
    %c34 = arith.constant 34 : index
    %320 = memref.load %arg1[%c34] : memref<81xf32, #tpu.memory_space<smem>>
    %321 = vector.broadcast %320 : f32 to vector<8x256xf32>
    %322 = arith.mulf %321, %315 : vector<8x256xf32>
    %323 = arith.addf %306, %322 : vector<8x256xf32>
    %c61 = arith.constant 61 : index
    %324 = memref.load %arg1[%c61] : memref<81xf32, #tpu.memory_space<smem>>
    %325 = vector.broadcast %324 : f32 to vector<8x256xf32>
    %326 = arith.mulf %325, %315 : vector<8x256xf32>
    %327 = arith.addf %310, %326 : vector<8x256xf32>
    %328 = vector.extract_strided_slice %314 {offsets = [8, 0], sizes = [8, 256], strides = [1, 1]} : vector<24x256xf32> to vector<8x256xf32>
    %c16 = arith.constant 16 : index
    %329 = memref.load %arg1[%c16] : memref<81xf32, #tpu.memory_space<smem>>
    %330 = vector.broadcast %329 : f32 to vector<8x256xf32>
    %331 = arith.mulf %330, %328 : vector<8x256xf32>
    %332 = arith.addf %319, %331 : vector<8x256xf32>
    %c43 = arith.constant 43 : index
    %333 = memref.load %arg1[%c43] : memref<81xf32, #tpu.memory_space<smem>>
    %334 = vector.broadcast %333 : f32 to vector<8x256xf32>
    %335 = arith.mulf %334, %328 : vector<8x256xf32>
    %336 = arith.addf %323, %335 : vector<8x256xf32>
    %c70 = arith.constant 70 : index
    %337 = memref.load %arg1[%c70] : memref<81xf32, #tpu.memory_space<smem>>
    %338 = vector.broadcast %337 : f32 to vector<8x256xf32>
    %339 = arith.mulf %338, %328 : vector<8x256xf32>
    %340 = arith.addf %327, %339 : vector<8x256xf32>
    %341 = vector.extract_strided_slice %314 {offsets = [16, 0], sizes = [8, 256], strides = [1, 1]} : vector<24x256xf32> to vector<8x256xf32>
    %c25 = arith.constant 25 : index
    %342 = memref.load %arg1[%c25] : memref<81xf32, #tpu.memory_space<smem>>
    %343 = vector.broadcast %342 : f32 to vector<8x256xf32>
    %344 = arith.mulf %343, %341 : vector<8x256xf32>
    %345 = arith.addf %332, %344 : vector<8x256xf32>
    %c52 = arith.constant 52 : index
    %346 = memref.load %arg1[%c52] : memref<81xf32, #tpu.memory_space<smem>>
    %347 = vector.broadcast %346 : f32 to vector<8x256xf32>
    %348 = arith.mulf %347, %341 : vector<8x256xf32>
    %349 = arith.addf %336, %348 : vector<8x256xf32>
    %c79 = arith.constant 79 : index
    %350 = memref.load %arg1[%c79] : memref<81xf32, #tpu.memory_space<smem>>
    %351 = vector.broadcast %350 : f32 to vector<8x256xf32>
    %352 = arith.mulf %351, %341 : vector<8x256xf32>
    %353 = arith.addf %340, %352 : vector<8x256xf32>
    %c239_i32 = arith.constant 239 : i32
    %354 = tpu.dynamic_rotate %7 by %c239_i32 dim 1 : vector<24x256xf32>, i32 -> vector<24x256xf32>
    %c8 = arith.constant 8 : index
    %c0_21 = arith.constant 0 : index
    %355 = vector.load %arg6[%c8, %c0_21] : memref<9x256xf32, #tpu.memory_space<vmem>>, vector<1x256xf32>
    %356 = vector.broadcast %355 : vector<1x256xf32> to vector<24x256xf32>
    %357 = arith.mulf %354, %356 : vector<24x256xf32>
    %358 = vector.extract_strided_slice %357 {offsets = [0, 0], sizes = [8, 256], strides = [1, 1]} : vector<24x256xf32> to vector<8x256xf32>
    %c8_22 = arith.constant 8 : index
    %359 = memref.load %arg1[%c8_22] : memref<81xf32, #tpu.memory_space<smem>>
    %360 = vector.broadcast %359 : f32 to vector<8x256xf32>
    %361 = arith.mulf %360, %358 : vector<8x256xf32>
    %362 = arith.addf %345, %361 : vector<8x256xf32>
    %c35 = arith.constant 35 : index
    %363 = memref.load %arg1[%c35] : memref<81xf32, #tpu.memory_space<smem>>
    %364 = vector.broadcast %363 : f32 to vector<8x256xf32>
    %365 = arith.mulf %364, %358 : vector<8x256xf32>
    %366 = arith.addf %349, %365 : vector<8x256xf32>
    %c62 = arith.constant 62 : index
    %367 = memref.load %arg1[%c62] : memref<81xf32, #tpu.memory_space<smem>>
    %368 = vector.broadcast %367 : f32 to vector<8x256xf32>
    %369 = arith.mulf %368, %358 : vector<8x256xf32>
    %370 = arith.addf %353, %369 : vector<8x256xf32>
    %371 = vector.extract_strided_slice %357 {offsets = [8, 0], sizes = [8, 256], strides = [1, 1]} : vector<24x256xf32> to vector<8x256xf32>
    %c17 = arith.constant 17 : index
    %372 = memref.load %arg1[%c17] : memref<81xf32, #tpu.memory_space<smem>>
    %373 = vector.broadcast %372 : f32 to vector<8x256xf32>
    %374 = arith.mulf %373, %371 : vector<8x256xf32>
    %375 = arith.addf %362, %374 : vector<8x256xf32>
    %c44 = arith.constant 44 : index
    %376 = memref.load %arg1[%c44] : memref<81xf32, #tpu.memory_space<smem>>
    %377 = vector.broadcast %376 : f32 to vector<8x256xf32>
    %378 = arith.mulf %377, %371 : vector<8x256xf32>
    %379 = arith.addf %366, %378 : vector<8x256xf32>
    %c71 = arith.constant 71 : index
    %380 = memref.load %arg1[%c71] : memref<81xf32, #tpu.memory_space<smem>>
    %381 = vector.broadcast %380 : f32 to vector<8x256xf32>
    %382 = arith.mulf %381, %371 : vector<8x256xf32>
    %383 = arith.addf %370, %382 : vector<8x256xf32>
    %384 = vector.extract_strided_slice %357 {offsets = [16, 0], sizes = [8, 256], strides = [1, 1]} : vector<24x256xf32> to vector<8x256xf32>
    %c26 = arith.constant 26 : index
    %385 = memref.load %arg1[%c26] : memref<81xf32, #tpu.memory_space<smem>>
    %386 = vector.broadcast %385 : f32 to vector<8x256xf32>
    %387 = arith.mulf %386, %384 : vector<8x256xf32>
    %388 = arith.addf %375, %387 : vector<8x256xf32>
    %c53 = arith.constant 53 : index
    %389 = memref.load %arg1[%c53] : memref<81xf32, #tpu.memory_space<smem>>
    %390 = vector.broadcast %389 : f32 to vector<8x256xf32>
    %391 = arith.mulf %390, %384 : vector<8x256xf32>
    %392 = arith.addf %379, %391 : vector<8x256xf32>
    %c80 = arith.constant 80 : index
    %393 = memref.load %arg1[%c80] : memref<81xf32, #tpu.memory_space<smem>>
    %394 = vector.broadcast %393 : f32 to vector<8x256xf32>
    %395 = arith.mulf %394, %384 : vector<8x256xf32>
    %396 = arith.addf %383, %395 : vector<8x256xf32>
    %397 = tpu.concatenate %388, %392, %396 in 0 : vector<8x256xf32>, vector<8x256xf32>, vector<8x256xf32> -> vector<24x256xf32>
    %398 = tpu.iota {dimensions = array<i32: 0>} : vector<24x1xi32>
    %c4_i32 = arith.constant 4 : i32
    %c0_i32 = arith.constant 0 : i32
    %399 = arith.cmpi eq, %c4_i32, %c0_i32 : i32
    %c1_i32_23 = arith.constant 1 : i32
    %400 = arith.select %399, %c1_i32_23, %c4_i32 : i32
    %401 = vector.broadcast %400 : i32 to vector<24x1xi32>
    %402 = arith.remsi %398, %401 : vector<24x1xi32>
    %c0_i32_24 = arith.constant 0 : i32
    %403 = vector.broadcast %c0_i32_24 : i32 to vector<24x1xi32>
    %404 = arith.cmpi ne, %402, %403 : vector<24x1xi32>
    %c0_i32_25 = arith.constant 0 : i32
    %405 = vector.broadcast %c0_i32_25 : i32 to vector<24x1xi32>
    %406 = arith.cmpi slt, %402, %405 : vector<24x1xi32>
    %c0_i32_26 = arith.constant 0 : i32
    %407 = arith.cmpi slt, %400, %c0_i32_26 : i32
    %408 = vector.broadcast %407 : i1 to vector<24x1xi1>
    %409 = vector.broadcast %408 : vector<24x1xi1> to vector<24x1xi1>
    %410 = arith.xori %406, %409 : vector<24x1xi1>
    %411 = arith.andi %410, %404 : vector<24x1xi1>
    %412 = vector.broadcast %400 : i32 to vector<24x1xi32>
    %413 = arith.addi %402, %412 : vector<24x1xi32>
    %414 = arith.select %411, %413, %402 : vector<24x1xi1>, vector<24x1xi32>
    %c0_i32_27 = arith.constant 0 : i32
    %415 = vector.broadcast %c0_i32_27 : i32 to vector<24x1xi32>
    %416 = arith.cmpi ne, %414, %415 : vector<24x1xi32>
    %c1_i32_28 = arith.constant 1 : i32
    %417 = tpu.dynamic_rotate %397 by %c1_i32_28 dim 0 : vector<24x256xf32>, i32 -> vector<24x256xf32>
    %cst_29 = arith.constant 0.000000e+00 : f32
    %418 = vector.shape_cast %416 : vector<24x1xi1> to vector<24x1xi1>
    %419 = vector.broadcast %418 : vector<24x1xi1> to vector<24x256xi1>
    %420 = vector.broadcast %cst_29 : f32 to vector<24x256xf32>
    %421 = arith.select %419, %417, %420 : vector<24x256xi1>, vector<24x256xf32>
    %c3_i32 = arith.constant 3 : i32
    %422 = vector.broadcast %c3_i32 : i32 to vector<24x1xi32>
    %423 = arith.cmpi ne, %414, %422 : vector<24x1xi32>
    %c23_i32 = arith.constant 23 : i32
    %424 = tpu.dynamic_rotate %397 by %c23_i32 dim 0 : vector<24x256xf32>, i32 -> vector<24x256xf32>
    %cst_30 = arith.constant 0.000000e+00 : f32
    %425 = vector.shape_cast %423 : vector<24x1xi1> to vector<24x1xi1>
    %426 = vector.broadcast %425 : vector<24x1xi1> to vector<24x256xi1>
    %427 = vector.broadcast %cst_30 : f32 to vector<24x256xf32>
    %428 = arith.select %426, %424, %427 : vector<24x256xi1>, vector<24x256xf32>
    %c0_31 = arith.constant 0 : index
    %429 = memref.load %arg4[%c0_31] : memref<3xf32, #tpu.memory_space<smem>>
    %430 = vector.broadcast %429 : f32 to vector<8x256xf32>
    %c1_32 = arith.constant 1 : index
    %431 = memref.load %arg4[%c1_32] : memref<3xf32, #tpu.memory_space<smem>>
    %432 = vector.broadcast %431 : f32 to vector<8x256xf32>
    %c2_33 = arith.constant 2 : index
    %433 = memref.load %arg4[%c2_33] : memref<3xf32, #tpu.memory_space<smem>>
    %434 = vector.broadcast %433 : f32 to vector<8x256xf32>
    %435 = vector.extract_strided_slice %421 {offsets = [0, 0], sizes = [8, 256], strides = [1, 1]} : vector<24x256xf32> to vector<8x256xf32>
    %436 = vector.extract_strided_slice %428 {offsets = [0, 0], sizes = [8, 256], strides = [1, 1]} : vector<24x256xf32> to vector<8x256xf32>
    %c0_34 = arith.constant 0 : index
    %437 = memref.load %arg3[%c0_34] : memref<27xf32, #tpu.memory_space<smem>>
    %438 = vector.broadcast %437 : f32 to vector<8x256xf32>
    %439 = arith.mulf %438, %435 : vector<8x256xf32>
    %440 = arith.addf %430, %439 : vector<8x256xf32>
    %c1_35 = arith.constant 1 : index
    %441 = memref.load %arg3[%c1_35] : memref<27xf32, #tpu.memory_space<smem>>
    %442 = vector.broadcast %441 : f32 to vector<8x256xf32>
    %443 = arith.mulf %442, %388 : vector<8x256xf32>
    %444 = arith.addf %440, %443 : vector<8x256xf32>
    %c2_36 = arith.constant 2 : index
    %445 = memref.load %arg3[%c2_36] : memref<27xf32, #tpu.memory_space<smem>>
    %446 = vector.broadcast %445 : f32 to vector<8x256xf32>
    %447 = arith.mulf %446, %436 : vector<8x256xf32>
    %448 = arith.addf %444, %447 : vector<8x256xf32>
    %c9_37 = arith.constant 9 : index
    %449 = memref.load %arg3[%c9_37] : memref<27xf32, #tpu.memory_space<smem>>
    %450 = vector.broadcast %449 : f32 to vector<8x256xf32>
    %451 = arith.mulf %450, %435 : vector<8x256xf32>
    %452 = arith.addf %432, %451 : vector<8x256xf32>
    %c10_38 = arith.constant 10 : index
    %453 = memref.load %arg3[%c10_38] : memref<27xf32, #tpu.memory_space<smem>>
    %454 = vector.broadcast %453 : f32 to vector<8x256xf32>
    %455 = arith.mulf %454, %388 : vector<8x256xf32>
    %456 = arith.addf %452, %455 : vector<8x256xf32>
    %c11_39 = arith.constant 11 : index
    %457 = memref.load %arg3[%c11_39] : memref<27xf32, #tpu.memory_space<smem>>
    %458 = vector.broadcast %457 : f32 to vector<8x256xf32>
    %459 = arith.mulf %458, %436 : vector<8x256xf32>
    %460 = arith.addf %456, %459 : vector<8x256xf32>
    %c18_40 = arith.constant 18 : index
    %461 = memref.load %arg3[%c18_40] : memref<27xf32, #tpu.memory_space<smem>>
    %462 = vector.broadcast %461 : f32 to vector<8x256xf32>
    %463 = arith.mulf %462, %435 : vector<8x256xf32>
    %464 = arith.addf %434, %463 : vector<8x256xf32>
    %c19_41 = arith.constant 19 : index
    %465 = memref.load %arg3[%c19_41] : memref<27xf32, #tpu.memory_space<smem>>
    %466 = vector.broadcast %465 : f32 to vector<8x256xf32>
    %467 = arith.mulf %466, %388 : vector<8x256xf32>
    %468 = arith.addf %464, %467 : vector<8x256xf32>
    %c20_42 = arith.constant 20 : index
    %469 = memref.load %arg3[%c20_42] : memref<27xf32, #tpu.memory_space<smem>>
    %470 = vector.broadcast %469 : f32 to vector<8x256xf32>
    %471 = arith.mulf %470, %436 : vector<8x256xf32>
    %472 = arith.addf %468, %471 : vector<8x256xf32>
    %473 = vector.extract_strided_slice %421 {offsets = [8, 0], sizes = [8, 256], strides = [1, 1]} : vector<24x256xf32> to vector<8x256xf32>
    %474 = vector.extract_strided_slice %428 {offsets = [8, 0], sizes = [8, 256], strides = [1, 1]} : vector<24x256xf32> to vector<8x256xf32>
    %c3_43 = arith.constant 3 : index
    %475 = memref.load %arg3[%c3_43] : memref<27xf32, #tpu.memory_space<smem>>
    %476 = vector.broadcast %475 : f32 to vector<8x256xf32>
    %477 = arith.mulf %476, %473 : vector<8x256xf32>
    %478 = arith.addf %448, %477 : vector<8x256xf32>
    %c4_44 = arith.constant 4 : index
    %479 = memref.load %arg3[%c4_44] : memref<27xf32, #tpu.memory_space<smem>>
    %480 = vector.broadcast %479 : f32 to vector<8x256xf32>
    %481 = arith.mulf %480, %392 : vector<8x256xf32>
    %482 = arith.addf %478, %481 : vector<8x256xf32>
    %c5_45 = arith.constant 5 : index
    %483 = memref.load %arg3[%c5_45] : memref<27xf32, #tpu.memory_space<smem>>
    %484 = vector.broadcast %483 : f32 to vector<8x256xf32>
    %485 = arith.mulf %484, %474 : vector<8x256xf32>
    %486 = arith.addf %482, %485 : vector<8x256xf32>
    %c12_46 = arith.constant 12 : index
    %487 = memref.load %arg3[%c12_46] : memref<27xf32, #tpu.memory_space<smem>>
    %488 = vector.broadcast %487 : f32 to vector<8x256xf32>
    %489 = arith.mulf %488, %473 : vector<8x256xf32>
    %490 = arith.addf %460, %489 : vector<8x256xf32>
    %c13_47 = arith.constant 13 : index
    %491 = memref.load %arg3[%c13_47] : memref<27xf32, #tpu.memory_space<smem>>
    %492 = vector.broadcast %491 : f32 to vector<8x256xf32>
    %493 = arith.mulf %492, %392 : vector<8x256xf32>
    %494 = arith.addf %490, %493 : vector<8x256xf32>
    %c14_48 = arith.constant 14 : index
    %495 = memref.load %arg3[%c14_48] : memref<27xf32, #tpu.memory_space<smem>>
    %496 = vector.broadcast %495 : f32 to vector<8x256xf32>
    %497 = arith.mulf %496, %474 : vector<8x256xf32>
    %498 = arith.addf %494, %497 : vector<8x256xf32>
    %c21_49 = arith.constant 21 : index
    %499 = memref.load %arg3[%c21_49] : memref<27xf32, #tpu.memory_space<smem>>
    %500 = vector.broadcast %499 : f32 to vector<8x256xf32>
    %501 = arith.mulf %500, %473 : vector<8x256xf32>
    %502 = arith.addf %472, %501 : vector<8x256xf32>
    %c22_50 = arith.constant 22 : index
    %503 = memref.load %arg3[%c22_50] : memref<27xf32, #tpu.memory_space<smem>>
    %504 = vector.broadcast %503 : f32 to vector<8x256xf32>
    %505 = arith.mulf %504, %392 : vector<8x256xf32>
    %506 = arith.addf %502, %505 : vector<8x256xf32>
    %c23_51 = arith.constant 23 : index
    %507 = memref.load %arg3[%c23_51] : memref<27xf32, #tpu.memory_space<smem>>
    %508 = vector.broadcast %507 : f32 to vector<8x256xf32>
    %509 = arith.mulf %508, %474 : vector<8x256xf32>
    %510 = arith.addf %506, %509 : vector<8x256xf32>
    %511 = vector.extract_strided_slice %421 {offsets = [16, 0], sizes = [8, 256], strides = [1, 1]} : vector<24x256xf32> to vector<8x256xf32>
    %512 = vector.extract_strided_slice %428 {offsets = [16, 0], sizes = [8, 256], strides = [1, 1]} : vector<24x256xf32> to vector<8x256xf32>
    %c6_52 = arith.constant 6 : index
    %513 = memref.load %arg3[%c6_52] : memref<27xf32, #tpu.memory_space<smem>>
    %514 = vector.broadcast %513 : f32 to vector<8x256xf32>
    %515 = arith.mulf %514, %511 : vector<8x256xf32>
    %516 = arith.addf %486, %515 : vector<8x256xf32>
    %c7_53 = arith.constant 7 : index
    %517 = memref.load %arg3[%c7_53] : memref<27xf32, #tpu.memory_space<smem>>
    %518 = vector.broadcast %517 : f32 to vector<8x256xf32>
    %519 = arith.mulf %518, %396 : vector<8x256xf32>
    %520 = arith.addf %516, %519 : vector<8x256xf32>
    %c8_54 = arith.constant 8 : index
    %521 = memref.load %arg3[%c8_54] : memref<27xf32, #tpu.memory_space<smem>>
    %522 = vector.broadcast %521 : f32 to vector<8x256xf32>
    %523 = arith.mulf %522, %512 : vector<8x256xf32>
    %524 = arith.addf %520, %523 : vector<8x256xf32>
    %c15_55 = arith.constant 15 : index
    %525 = memref.load %arg3[%c15_55] : memref<27xf32, #tpu.memory_space<smem>>
    %526 = vector.broadcast %525 : f32 to vector<8x256xf32>
    %527 = arith.mulf %526, %511 : vector<8x256xf32>
    %528 = arith.addf %498, %527 : vector<8x256xf32>
    %c16_56 = arith.constant 16 : index
    %529 = memref.load %arg3[%c16_56] : memref<27xf32, #tpu.memory_space<smem>>
    %530 = vector.broadcast %529 : f32 to vector<8x256xf32>
    %531 = arith.mulf %530, %396 : vector<8x256xf32>
    %532 = arith.addf %528, %531 : vector<8x256xf32>
    %c17_57 = arith.constant 17 : index
    %533 = memref.load %arg3[%c17_57] : memref<27xf32, #tpu.memory_space<smem>>
    %534 = vector.broadcast %533 : f32 to vector<8x256xf32>
    %535 = arith.mulf %534, %512 : vector<8x256xf32>
    %536 = arith.addf %532, %535 : vector<8x256xf32>
    %c24_58 = arith.constant 24 : index
    %537 = memref.load %arg3[%c24_58] : memref<27xf32, #tpu.memory_space<smem>>
    %538 = vector.broadcast %537 : f32 to vector<8x256xf32>
    %539 = arith.mulf %538, %511 : vector<8x256xf32>
    %540 = arith.addf %510, %539 : vector<8x256xf32>
    %c25_59 = arith.constant 25 : index
    %541 = memref.load %arg3[%c25_59] : memref<27xf32, #tpu.memory_space<smem>>
    %542 = vector.broadcast %541 : f32 to vector<8x256xf32>
    %543 = arith.mulf %542, %396 : vector<8x256xf32>
    %544 = arith.addf %540, %543 : vector<8x256xf32>
    %c26_60 = arith.constant 26 : index
    %545 = memref.load %arg3[%c26_60] : memref<27xf32, #tpu.memory_space<smem>>
    %546 = vector.broadcast %545 : f32 to vector<8x256xf32>
    %547 = arith.mulf %546, %512 : vector<8x256xf32>
    %548 = arith.addf %544, %547 : vector<8x256xf32>
    %549 = tpu.concatenate %524, %536, %548 in 0 : vector<8x256xf32>, vector<8x256xf32>, vector<8x256xf32> -> vector<24x256xf32>
    %c0_61 = arith.constant 0 : index
    %c0_62 = arith.constant 0 : index
    %c0_63 = arith.constant 0 : index
    %550 = vector.load %arg8[%c0_61, %c0_62, %c0_63] : memref<1x24x256xf32, #tpu.memory_space<vmem>>, vector<1x24x256xf32>
    %551 = vector.shape_cast %550 : vector<1x24x256xf32> to vector<24x256xf32>
    %552 = vector.shape_cast %549 : vector<24x256xf32> to vector<1x24x256xf32>
    tpu.vector_store %arg8[%c0_61, %c0_62, %c0_63], %552 {strides = array<i32>} : memref<1x24x256xf32, #tpu.memory_space<vmem>>, vector<1x24x256xf32>,
    return
  }
  func.func @transform_0(%arg0: i32) -> i32 {
    %c0_i32 = arith.constant 0 : i32
    %c0_i32_0 = arith.constant 0 : i32
    return %c0_i32 : i32
  }
  func.func @transform_1(%arg0: i32) -> i32 {
    %c0_i32 = arith.constant 0 : i32
    %c0_i32_0 = arith.constant 0 : i32
    return %c0_i32 : i32
  }
  func.func @transform_2(%arg0: i32) -> i32 {
    %c0_i32 = arith.constant 0 : i32
    %c0_i32_0 = arith.constant 0 : i32
    return %c0_i32 : i32
  }
  func.func @transform_3(%arg0: i32) -> i32 {
    %c0_i32 = arith.constant 0 : i32
    %c0_i32_0 = arith.constant 0 : i32
    return %c0_i32 : i32
  }
  func.func @transform_4(%arg0: i32) -> i32 {
    %c0_i32 = arith.constant 0 : i32
    %c0_i32_0 = arith.constant 0 : i32
    return %c0_i32 : i32
  }
  func.func @transform_5(%arg0: i32) -> (i32, i32) {
    %c0_i32 = arith.constant 0 : i32
    %c0_i32_0 = arith.constant 0 : i32
    %c0_i32_1 = arith.constant 0 : i32
    return %c0_i32, %c0_i32_0 : i32, i32
  }
  func.func @transform_6(%arg0: i32) -> (i32, i32, i32) {
    %c0_i32 = arith.constant 0 : i32
    %c0_i32_0 = arith.constant 0 : i32
    %c0_i32_1 = arith.constant 0 : i32
    return %arg0, %c0_i32, %c0_i32_0 : i32, i32, i32
  }
  func.func @transform_7(%arg0: i32) -> (i32, i32, i32) {
    %c0_i32 = arith.constant 0 : i32
    %c0_i32_0 = arith.constant 0 : i32
    %c0_i32_1 = arith.constant 0 : i32
    return %arg0, %c0_i32, %c0_i32_0 : i32, i32, i32
  }
}

</mosaic_0001>

<llo_original>
// kernel: tpu_custom_call.1
$region0: #{tpu_custom_call.1}
  #allocation0 [shape = 'u32[]', space=smem, size = 0x4, offset = 0x4, fixed_abs, tag = 'smem constant byte address 0x4 - core index']
  #allocation1 [shape = 'u32[144,128]{1,0:T(1,128)}', space=vmem, size = 0x12000, scoped, tag = 'internal scratch']
  #allocation2 [shape = 'f32[1]{0:T(128)S(6)}', space=smem, size = 0x200, scoped, tag = 'scoped memory for tpu_custom_call.1']
  %s0 = inlined_call_operand.vmem [shape: f32[81], index: 0, kind: input, shape index: {}]
  %s1 = inlined_call_operand.vmem [shape: f32[3], index: 1, kind: input, shape index: {}]
  %s2 = inlined_call_operand.vmem [shape: f32[27], index: 2, kind: input, shape index: {}]
  %s3 = inlined_call_operand.vmem [shape: f32[3], index: 3, kind: input, shape index: {}]
  %s4 = inlined_call_operand.<no memory space> [shape: f32[1], index: 4, kind: input, shape index: {}]
  %s5 = inlined_call_operand.hbm [shape: f32[9,256], index: 5, kind: input, shape index: {}]
  %s6 = inlined_call_operand.hbm [shape: f32[1,24,256], index: 6, kind: input, shape index: {}]
  %s7 = inlined_call_operand.hbm [shape: f32[1,24,256], index: 7, kind: output, shape index: {}]
  %s8 = sld [smem:[#allocation0]]
  $region62: #{tpu_custom_call.1} parent=0
    _
  %s10 = ssub.s32 1, %s8
  %s11 = scalar_select 0, %s10, %s8
  %12 = sst [smem:[#allocation2]] %s4
  $region1: #{tpu_custom_call.1} parent=0
    #allocation3 [shape = 'u8[512]{0}', space=smem, size = 0x200, scoped, tag = 'input window, operand 0, single buffered']
    #allocation4 [shape = 's32[1]{0}', space=sflag, size = 0x4, scoped, tag = 'scoped memory for tpu_custom_call.1']
    #allocation5 [shape = 's32[1]{0}', space=sflag, size = 0x4, scoped, tag = 'scoped memory for tpu_custom_call.1']
    #allocation6 [shape = 's32[1]{0}', space=sflag, size = 0x4, scoped, tag = 'scoped memory for tpu_custom_call.1']
    #allocation7 [shape = 'u8[512]{0}', space=smem, size = 0x200, scoped, tag = 'input window, operand 1, single buffered']
    #allocation8 [shape = 's32[1]{0}', space=sflag, size = 0x4, scoped, tag = 'scoped memory for tpu_custom_call.1']
    #allocation9 [shape = 'u8[512]{0}', space=smem, size = 0x200, scoped, tag = 'input window, operand 2, single buffered']
    #allocation10 [shape = 'u8[512]{0}', space=smem, size = 0x200, scoped, tag = 'input window, operand 3, single buffered']
    #allocation11 [shape = 's32[1]{0}', space=sflag, size = 0x4, scoped, tag = 'scoped memory for tpu_custom_call.1']
    #allocation12 [shape = 'u8[16384]{0}', space=vmem, size = 0x4000, scoped, tag = 'input window, operand 5, single buffered']
    #allocation13 [shape = 'u8[24576]{0}', space=vmem, size = 0x6000, scoped, tag = 'input window, operand 6, single buffered']
    #allocation14 [shape = 's32[1]{0}', space=sflag, size = 0x4, scoped, tag = 'scoped memory for tpu_custom_call.1']
    #allocation15 [shape = 'u8[24576]{0}', space=vmem, size = 0x6000, scoped, tag = 'output window, operand 0, single buffered']
    %13 = vsyncpa [#allocation6], 0
    %14 = vsyncpa [#allocation8], 0
    %15 = vsyncpa [#allocation11], 0
    %16 = vsyncpa [#allocation4], 0
    %17 = vsyncpa [#allocation14], 0
    %18 = vsyncpa [#allocation5], 0
    // Predicated region
    $region2: #{tpu_custom_call.1} parent=1 // pred_check
      _
    $region3: #{tpu_custom_call.1} parent=1 // pred_check_branch
      %20 = sbr.rel (0) target = $region5
    $region4: #{tpu_custom_call.1} parent=1 // pred_region
      %s22 = ssub.s32 16, 16
      %23 = vsyncadd [#allocation6], %s22
      %s25 = sshll.u32 %s0, 4
      %s26 = int_to_ptr.vmem [resolvable:$true] %s25
      %28 = dma.vmem_to_smem %s26, 16, [#allocation3], [#allocation6]
    $region5: #{tpu_custom_call.1} parent=1 // pred_fallthru
      _
    // Predicated region
    $region6: #{tpu_custom_call.1} parent=1 // pred_check
      _
    $region7: #{tpu_custom_call.1} parent=1 // pred_check_branch
      %30 = sbr.rel (0) target = $region9
    $region8: #{tpu_custom_call.1} parent=1 // pred_region
      %s32 = ssub.s32 16, 16
      %33 = vsyncadd [#allocation8], %s32
      %s35 = sshll.u32 %s1, 4
      %s36 = int_to_ptr.vmem [resolvable:$true] %s35
      %38 = dma.vmem_to_smem %s36, 16, [#allocation7], [#allocation8]
    $region9: #{tpu_custom_call.1} parent=1 // pred_fallthru
      _
    // Predicated region
    $region10: #{tpu_custom_call.1} parent=1 // pred_check
      _
    $region11: #{tpu_custom_call.1} parent=1 // pred_check_branch
      %40 = sbr.rel (0) target = $region13
    $region12: #{tpu_custom_call.1} parent=1 // pred_region
      %s42 = ssub.s32 16, 16
      %43 = vsyncadd [#allocation8], %s42
      %s45 = sshll.u32 %s2, 4
      %s46 = int_to_ptr.vmem [resolvable:$true] %s45
      %48 = dma.vmem_to_smem %s46, 16, [#allocation9], [#allocation8]
    $region13: #{tpu_custom_call.1} parent=1 // pred_fallthru
      _
    // Predicated region
    $region14: #{tpu_custom_call.1} parent=1 // pred_check
      _
    $region15: #{tpu_custom_call.1} parent=1 // pred_check_branch
      %50 = sbr.rel (0) target = $region17
    $region16: #{tpu_custom_call.1} parent=1 // pred_region
      %s52 = ssub.s32 16, 16
      %53 = vsyncadd [#allocation11], %s52
      %s55 = sshll.u32 %s3, 4
      %s56 = int_to_ptr.vmem [resolvable:$true] %s55
      %58 = dma.vmem_to_smem %s56, 16, [#allocation10], [#allocation11]
    $region17: #{tpu_custom_call.1} parent=1 // pred_fallthru
      _
    // Predicated region
    $region18: #{tpu_custom_call.1} parent=1 // pred_check
      _
    $region19: #{tpu_custom_call.1} parent=1 // pred_check_branch
      %60 = sbr.rel (0) target = $region21
    $region20: #{tpu_custom_call.1} parent=1 // pred_region
      _
    $region21: #{tpu_custom_call.1} parent=1 // pred_fallthru
      _
    // Predicated region
    $region22: #{tpu_custom_call.1} parent=1 // pred_check
      _
    $region23: #{tpu_custom_call.1} parent=1 // pred_check_branch
      %62 = sbr.rel (0) target = $region25
    $region24: #{tpu_custom_call.1} parent=1 // pred_region
      %s64 = ssub.s32 512, 512
      %65 = vsyncadd [#allocation4], %s64
      %s66 = sshll.u32 [#allocation12], 4
      %s67 = int_to_ptr.vmem [resolvable:$true] %s66
      %72 = dma.hbm_to_vmem [thread:$0]  %s5, 512, %s67, [#allocation4], 256, 256, 16
    $region25: #{tpu_custom_call.1} parent=1 // pred_fallthru
      _
    // Predicated region
    $region26: #{tpu_custom_call.1} parent=1 // pred_check
      _
    $region27: #{tpu_custom_call.1} parent=1 // pred_check_branch
      %74 = sbr.rel (0) target = $region29
    $region28: #{tpu_custom_call.1} parent=1 // pred_region
      %s76 = ssub.s32 768, 768
      %77 = vsyncadd [#allocation14], %s76
      %s78 = sshll.u32 [#allocation13], 4
      %s79 = int_to_ptr.vmem [resolvable:$true] %s78
      %84 = dma.hbm_to_vmem [thread:$0]  %s6, 768, %s79, [#allocation14], 256, 256, 16
    $region29: #{tpu_custom_call.1} parent=1 // pred_fallthru
      _
    // Predicated region
    $region30: #{tpu_custom_call.1} parent=1 // pred_check
      _
    $region31: #{tpu_custom_call.1} parent=1 // pred_check_branch
      %86 = sbr.rel (0) target = $region33
    $region32: #{tpu_custom_call.1} parent=1 // pred_region
      %87 = dma.done [#allocation6], 16
    $region33: #{tpu_custom_call.1} parent=1 // pred_fallthru
      _
    // Predicated region
    $region34: #{tpu_custom_call.1} parent=1 // pred_check
      _
    $region35: #{tpu_custom_call.1} parent=1 // pred_check_branch
      %89 = sbr.rel (0) target = $region37
    $region36: #{tpu_custom_call.1} parent=1 // pred_region
      %90 = dma.done [#allocation8], 16
    $region37: #{tpu_custom_call.1} parent=1 // pred_fallthru
      _
    // Predicated region
    $region38: #{tpu_custom_call.1} parent=1 // pred_check
      _
    $region39: #{tpu_custom_call.1} parent=1 // pred_check_branch
      %92 = sbr.rel (0) target = $region41
    $region40: #{tpu_custom_call.1} parent=1 // pred_region
      %93 = dma.done [#allocation8], 16
    $region41: #{tpu_custom_call.1} parent=1 // pred_fallthru
      _
    // Predicated region
    $region42: #{tpu_custom_call.1} parent=1 // pred_check
      _
    $region43: #{tpu_custom_call.1} parent=1 // pred_check_branch
      %95 = sbr.rel (0) target = $region45
    $region44: #{tpu_custom_call.1} parent=1 // pred_region
      %96 = dma.done [#allocation11], 16
    $region45: #{tpu_custom_call.1} parent=1 // pred_fallthru
      _
    // Predicated region
    $region46: #{tpu_custom_call.1} parent=1 // pred_check
      _
    $region47: #{tpu_custom_call.1} parent=1 // pred_check_branch
      %98 = sbr.rel (0) target = $region49
    $region48: #{tpu_custom_call.1} parent=1 // pred_region
      %99 = dma.done [#allocation4], 512
    $region49: #{tpu_custom_call.1} parent=1 // pred_fallthru
      _
    // Predicated region
    $region50: #{tpu_custom_call.1} parent=1 // pred_check
      _
    $region51: #{tpu_custom_call.1} parent=1 // pred_check_branch
      %101 = sbr.rel (0) target = $region53
    $region52: #{tpu_custom_call.1} parent=1 // pred_region
      %102 = dma.done [#allocation14], 768
    $region53: #{tpu_custom_call.1} parent=1 // pred_fallthru
      _
    %103 = sfence
    %v104 = vld [vmem:[#allocation13] sm:$0xff]
    %v105 = vld [vmem:[#allocation13 + $0x8] sm:$0xff]
    %v106 = vld [vmem:[#allocation13 + $0x10] sm:$0xff]
    %v107 = vld [vmem:[#allocation13 + $0x18] sm:$0xff]
    %v108 = vld [vmem:[#allocation13 + $0x20] sm:$0xff]
    %v109 = vld [vmem:[#allocation13 + $0x28] sm:$0xff]
    %s110 = sld [smem:[#allocation2]]
    %vm111 = vcmp.ge.f32.partialorder %v104, 0.0
    %vm112 = vcmp.ge.f32.partialorder %v105, 0.0
    %vm113 = vcmp.ge.f32.partialorder %v106, 0.0
    %vm114 = vcmp.ge.f32.partialorder %v107, 0.0
    %vm115 = vcmp.ge.f32.partialorder %v108, 0.0
    %vm116 = vcmp.ge.f32.partialorder %v109, 0.0
    %v117 = vstv %s110
    %v118 = vmul.f32 %v117, %v104
    %v119 = vmul.f32 %v117, %v105
    %v120 = vmul.f32 %v117, %v106
    %v121 = vmul.f32 %v117, %v107
    %v122 = vmul.f32 %v117, %v108
    %v123 = vmul.f32 %v117, %v109
    %v124 = vsel %vm111, %v104, %v118
    %v125 = vsel %vm112, %v105, %v119
    %v126 = vsel %vm113, %v106, %v120
    %v127 = vsel %vm114, %v107, %v121
    %v128 = vsel %vm115, %v108, %v122
    %v129 = vsel %vm116, %v109, %v123
    %s130 = sld [smem:[#allocation7]]
    %v131 = vstv %s130
    %s132 = sld [smem:[#allocation7 + $0x1]]
    %v133 = vstv %s132
    %s134 = sld [smem:[#allocation7 + $0x2]]
    %v135 = vstv %s134
    %136 = vrot.lane.b32.xlu0 %v124, 17
    %v137 = vpop.permute.xlu0 %136
    %138 = vrot.lane.b32.xlu0 %v126, 17
    %v139 = vpop.permute.xlu0 %138
    %140 = vrot.lane.b32.xlu0 %v128, 17
    %v141 = vpop.permute.xlu0 %140
    %142 = vrot.lane.b32.xlu0 %v125, 17
    %v143 = vpop.permute.xlu0 %142
    %144 = vrot.lane.b32.xlu0 %v127, 17
    %v145 = vpop.permute.xlu0 %144
    %146 = vrot.lane.b32.xlu0 %v129, 17
    %v147 = vpop.permute.xlu0 %146
    %v148 = vlaneseq
    %v149 = vand.u32 %v148, 127
    %vm150 = vcmp.lt.s32.totalorder %v149, 17
    %v151 = vsel %vm150, %v137, %v143
    %v152 = vsel %vm150, %v139, %v145
    %v153 = vsel %vm150, %v141, %v147
    %v154 = vsel %vm150, %v143, %v137
    %v155 = vsel %vm150, %v145, %v139
    %v156 = vsel %vm150, %v147, %v141
    %v157 = vld [vmem:[#allocation12] ss:$8 sm:$0x3]
    %v159 = vlaneseq
    %v160 = vshrl.u32 %v159, 7
    %v161 = vsub.s32 0, %v160
    %v162 = vrot.slane %v157, %v161
    %v163 = vlaneseq
    %v164 = vshrl.u32 %v163, 7
    %v165 = vsub.s32 1, %v164
    %v166 = vrot.slane %v157, %v165
    %v169 = vmul.f32 %v154, %v162
    %v170 = vmul.f32 %v151, %v166
    %v171 = vmul.f32 %v155, %v162
    %v172 = vmul.f32 %v152, %v166
    %v173 = vmul.f32 %v156, %v162
    %v174 = vmul.f32 %v153, %v166
    %s175 = sld [smem:[#allocation3]]
    %v176 = vstv %s175
    %v177 = vmul.f32 %v176, %v169
    %v178 = vmul.f32 %v176, %v170
    %v179 = vadd.f32 %v131, %v177
    %v180 = vadd.f32 %v131, %v178
    %s181 = sld [smem:[#allocation3 + $0x1b]]
    %v182 = vstv %s181
    %v183 = vmul.f32 %v182, %v169
    %v184 = vmul.f32 %v182, %v170
    %v185 = vadd.f32 %v133, %v183
    %v186 = vadd.f32 %v133, %v184
    %s187 = sld [smem:[#allocation3 + $0x36]]
    %v188 = vstv %s187
    %v189 = vmul.f32 %v188, %v169
    %v190 = vmul.f32 %v188, %v170
    %v191 = vadd.f32 %v135, %v189
    %v192 = vadd.f32 %v135, %v190
    %s193 = sld [smem:[#allocation3 + $0x9]]
    %v194 = vstv %s193
    %v195 = vmul.f32 %v194, %v171
    %v196 = vmul.f32 %v194, %v172
    %v197 = vadd.f32 %v179, %v195
    %v198 = vadd.f32 %v180, %v196
    %s199 = sld [smem:[#allocation3 + $0x24]]
    %v200 = vstv %s199
    %v201 = vmul.f32 %v200, %v171
    %v202 = vmul.f32 %v200, %v172
    %v203 = vadd.f32 %v185, %v201
    %v204 = vadd.f32 %v186, %v202
    %s205 = sld [smem:[#allocation3 + $0x3f]]
    %v206 = vstv %s205
    %v207 = vmul.f32 %v206, %v171
    %v208 = vmul.f32 %v206, %v172
    %v209 = vadd.f32 %v191, %v207
    %v210 = vadd.f32 %v192, %v208
    %s211 = sld [smem:[#allocation3 + $0x12]]
    %v212 = vstv %s211
    %v213 = vmul.f32 %v212, %v173
    %v214 = vmul.f32 %v212, %v174
    %v215 = vadd.f32 %v197, %v213
    %v216 = vadd.f32 %v198, %v214
    %s217 = sld [smem:[#allocation3 + $0x2d]]
    %v218 = vstv %s217
    %v219 = vmul.f32 %v218, %v173
    %v220 = vmul.f32 %v218, %v174
    %v221 = vadd.f32 %v203, %v219
    %v222 = vadd.f32 %v204, %v220
    %s223 = sld [smem:[#allocation3 + $0x48]]
    %v224 = vstv %s223
    %v225 = vmul.f32 %v224, %v173
    %v226 = vmul.f32 %v224, %v174
    %v227 = vadd.f32 %v209, %v225
    %v228 = vadd.f32 %v210, %v226
    %229 = vrot.lane.b32.xlu0 %v124, 16
    %v230 = vpop.permute.xlu0 %229
    %231 = vrot.lane.b32.xlu0 %v126, 16
    %v232 = vpop.permute.xlu0 %231
    %233 = vrot.lane.b32.xlu0 %v128, 16
    %v234 = vpop.permute.xlu0 %233
    %235 = vrot.lane.b32.xlu0 %v125, 16
    %v236 = vpop.permute.xlu0 %235
    %237 = vrot.lane.b32.xlu0 %v127, 16
    %v238 = vpop.permute.xlu0 %237
    %239 = vrot.lane.b32.xlu0 %v129, 16
    %v240 = vpop.permute.xlu0 %239
    %vm241 = vcmp.lt.s32.totalorder %v149, 16
    %v242 = vsel %vm241, %v230, %v236
    %v243 = vsel %vm241, %v232, %v238
    %v244 = vsel %vm241, %v234, %v240
    %v245 = vsel %vm241, %v236, %v230
    %v246 = vsel %vm241, %v238, %v232
    %v247 = vsel %vm241, %v240, %v234
    %s248 = scalar_lea.vmem [#allocation12], 1
    %v249 = vld [vmem:[%s248] ss:$8 sm:$0x3]
    %v251 = vlaneseq
    %v252 = vshrl.u32 %v251, 7
    %v253 = vsub.s32 0, %v252
    %v254 = vrot.slane %v249, %v253
    %v255 = vlaneseq
    %v256 = vshrl.u32 %v255, 7
    %v257 = vsub.s32 1, %v256
    %v258 = vrot.slane %v249, %v257
    %v261 = vmul.f32 %v245, %v254
    %v262 = vmul.f32 %v242, %v258
    %v263 = vmul.f32 %v246, %v254
    %v264 = vmul.f32 %v243, %v258
    %v265 = vmul.f32 %v247, %v254
    %v266 = vmul.f32 %v244, %v258
    %s267 = sld [smem:[#allocation3 + $0x1]]
    %v268 = vstv %s267
    %v269 = vmul.f32 %v268, %v261
    %v270 = vmul.f32 %v268, %v262
    %v271 = vadd.f32 %v215, %v269
    %v272 = vadd.f32 %v216, %v270
    %s273 = sld [smem:[#allocation3 + $0x1c]]
    %v274 = vstv %s273
    %v275 = vmul.f32 %v274, %v261
    %v276 = vmul.f32 %v274, %v262
    %v277 = vadd.f32 %v221, %v275
    %v278 = vadd.f32 %v222, %v276
    %s279 = sld [smem:[#allocation3 + $0x37]]
    %v280 = vstv %s279
    %v281 = vmul.f32 %v280, %v261
    %v282 = vmul.f32 %v280, %v262
    %v283 = vadd.f32 %v227, %v281
    %v284 = vadd.f32 %v228, %v282
    %s285 = sld [smem:[#allocation3 + $0xa]]
    %v286 = vstv %s285
    %v287 = vmul.f32 %v286, %v263
    %v288 = vmul.f32 %v286, %v264
    %v289 = vadd.f32 %v271, %v287
    %v290 = vadd.f32 %v272, %v288
    %s291 = sld [smem:[#allocation3 + $0x25]]
    %v292 = vstv %s291
    %v293 = vmul.f32 %v292, %v263
    %v294 = vmul.f32 %v292, %v264
    %v295 = vadd.f32 %v277, %v293
    %v296 = vadd.f32 %v278, %v294
    %s297 = sld [smem:[#allocation3 + $0x40]]
    %v298 = vstv %s297
    %v299 = vmul.f32 %v298, %v263
    %v300 = vmul.f32 %v298, %v264
    %v301 = vadd.f32 %v283, %v299
    %v302 = vadd.f32 %v284, %v300
    %s303 = sld [smem:[#allocation3 + $0x13]]
    %v304 = vstv %s303
    %v305 = vmul.f32 %v304, %v265
    %v306 = vmul.f32 %v304, %v266
    %v307 = vadd.f32 %v289, %v305
    %v308 = vadd.f32 %v290, %v306
    %s309 = sld [smem:[#allocation3 + $0x2e]]
    %v310 = vstv %s309
    %v311 = vmul.f32 %v310, %v265
    %v312 = vmul.f32 %v310, %v266
    %v313 = vadd.f32 %v295, %v311
    %v314 = vadd.f32 %v296, %v312
    %s315 = sld [smem:[#allocation3 + $0x49]]
    %v316 = vstv %s315
    %v317 = vmul.f32 %v316, %v265
    %v318 = vmul.f32 %v316, %v266
    %v319 = vadd.f32 %v301, %v317
    %v320 = vadd.f32 %v302, %v318
    %321 = vrot.lane.b32.xlu0 %v124, 15
    %v322 = vpop.permute.xlu0 %321
    %323 = vrot.lane.b32.xlu0 %v126, 15
    %v324 = vpop.permute.xlu0 %323
    %325 = vrot.lane.b32.xlu0 %v128, 15
    %v326 = vpop.permute.xlu0 %325
    %327 = vrot.lane.b32.xlu0 %v125, 15
    %v328 = vpop.permute.xlu0 %327
    %329 = vrot.lane.b32.xlu0 %v127, 15
    %v330 = vpop.permute.xlu0 %329
    %331 = vrot.lane.b32.xlu0 %v129, 15
    %v332 = vpop.permute.xlu0 %331
    %vm333 = vcmp.lt.s32.totalorder %v149, 15
    %v334 = vsel %vm333, %v322, %v328
    %v335 = vsel %vm333, %v324, %v330
    %v336 = vsel %vm333, %v326, %v332
    %v337 = vsel %vm333, %v328, %v322
    %v338 = vsel %vm333, %v330, %v324
    %v339 = vsel %vm333, %v332, %v326
    %s340 = scalar_lea.vmem [#allocation12], 2
    %v341 = vld [vmem:[%s340] ss:$8 sm:$0x3]
    %v343 = vlaneseq
    %v344 = vshrl.u32 %v343, 7
    %v345 = vsub.s32 0, %v344
    %v346 = vrot.slane %v341, %v345
    %v347 = vlaneseq
    %v348 = vshrl.u32 %v347, 7
    %v349 = vsub.s32 1, %v348
    %v350 = vrot.slane %v341, %v349
    %v353 = vmul.f32 %v337, %v346
    %v354 = vmul.f32 %v334, %v350
    %v355 = vmul.f32 %v338, %v346
    %v356 = vmul.f32 %v335, %v350
    %v357 = vmul.f32 %v339, %v346
    %v358 = vmul.f32 %v336, %v350
    %s359 = sld [smem:[#allocation3 + $0x2]]
    %v360 = vstv %s359
    %v361 = vmul.f32 %v360, %v353
    %v362 = vmul.f32 %v360, %v354
    %v363 = vadd.f32 %v307, %v361
    %v364 = vadd.f32 %v308, %v362
    %s365 = sld [smem:[#allocation3 + $0x1d]]
    %v366 = vstv %s365
    %v367 = vmul.f32 %v366, %v353
    %v368 = vmul.f32 %v366, %v354
    %v369 = vadd.f32 %v313, %v367
    %v370 = vadd.f32 %v314, %v368
    %s371 = sld [smem:[#allocation3 + $0x38]]
    %v372 = vstv %s371
    %v373 = vmul.f32 %v372, %v353
    %v374 = vmul.f32 %v372, %v354
    %v375 = vadd.f32 %v319, %v373
    %v376 = vadd.f32 %v320, %v374
    %s377 = sld [smem:[#allocation3 + $0xb]]
    %v378 = vstv %s377
    %v379 = vmul.f32 %v378, %v355
    %v380 = vmul.f32 %v378, %v356
    %v381 = vadd.f32 %v363, %v379
    %v382 = vadd.f32 %v364, %v380
    %s383 = sld [smem:[#allocation3 + $0x26]]
    %v384 = vstv %s383
    %v385 = vmul.f32 %v384, %v355
    %v386 = vmul.f32 %v384, %v356
    %v387 = vadd.f32 %v369, %v385
    %v388 = vadd.f32 %v370, %v386
    %s389 = sld [smem:[#allocation3 + $0x41]]
    %v390 = vstv %s389
    %v391 = vmul.f32 %v390, %v355
    %v392 = vmul.f32 %v390, %v356
    %v393 = vadd.f32 %v375, %v391
    %v394 = vadd.f32 %v376, %v392
    %s395 = sld [smem:[#allocation3 + $0x14]]
    %v396 = vstv %s395
    %v397 = vmul.f32 %v396, %v357
    %v398 = vmul.f32 %v396, %v358
    %v399 = vadd.f32 %v381, %v397
    %v400 = vadd.f32 %v382, %v398
    %s401 = sld [smem:[#allocation3 + $0x2f]]
    %v402 = vstv %s401
    %v403 = vmul.f32 %v402, %v357
    %v404 = vmul.f32 %v402, %v358
    %v405 = vadd.f32 %v387, %v403
    %v406 = vadd.f32 %v388, %v404
    %s407 = sld [smem:[#allocation3 + $0x4a]]
    %v408 = vstv %s407
    %v409 = vmul.f32 %v408, %v357
    %v410 = vmul.f32 %v408, %v358
    %v411 = vadd.f32 %v393, %v409
    %v412 = vadd.f32 %v394, %v410
    %413 = vrot.lane.b32.xlu0 %v124, 1
    %v414 = vpop.permute.xlu0 %413
    %415 = vrot.lane.b32.xlu0 %v126, 1
    %v416 = vpop.permute.xlu0 %415
    %417 = vrot.lane.b32.xlu0 %v128, 1
    %v418 = vpop.permute.xlu0 %417
    %419 = vrot.lane.b32.xlu0 %v125, 1
    %v420 = vpop.permute.xlu0 %419
    %421 = vrot.lane.b32.xlu0 %v127, 1
    %v422 = vpop.permute.xlu0 %421
    %423 = vrot.lane.b32.xlu0 %v129, 1
    %v424 = vpop.permute.xlu0 %423
    %vm425 = vcmp.lt.s32.totalorder %v149, 1
    %v426 = vsel %vm425, %v414, %v420
    %v427 = vsel %vm425, %v416, %v422
    %v428 = vsel %vm425, %v418, %v424
    %v429 = vsel %vm425, %v420, %v414
    %v430 = vsel %vm425, %v422, %v416
    %v431 = vsel %vm425, %v424, %v418
    %s432 = scalar_lea.vmem [#allocation12], 3
    %v433 = vld [vmem:[%s432] ss:$8 sm:$0x3]
    %v435 = vlaneseq
    %v436 = vshrl.u32 %v435, 7
    %v437 = vsub.s32 0, %v436
    %v438 = vrot.slane %v433, %v437
    %v439 = vlaneseq
    %v440 = vshrl.u32 %v439, 7
    %v441 = vsub.s32 1, %v440
    %v442 = vrot.slane %v433, %v441
    %v445 = vmul.f32 %v429, %v438
    %v446 = vmul.f32 %v426, %v442
    %v447 = vmul.f32 %v430, %v438
    %v448 = vmul.f32 %v427, %v442
    %v449 = vmul.f32 %v431, %v438
    %v450 = vmul.f32 %v428, %v442
    %s451 = sld [smem:[#allocation3 + $0x3]]
    %v452 = vstv %s451
    %v453 = vmul.f32 %v452, %v445
    %v454 = vmul.f32 %v452, %v446
    %v455 = vadd.f32 %v399, %v453
    %v456 = vadd.f32 %v400, %v454
    %s457 = sld [smem:[#allocation3 + $0x1e]]
    %v458 = vstv %s457
    %v459 = vmul.f32 %v458, %v445
    %v460 = vmul.f32 %v458, %v446
    %v461 = vadd.f32 %v405, %v459
    %v462 = vadd.f32 %v406, %v460
    %s463 = sld [smem:[#allocation3 + $0x39]]
    %v464 = vstv %s463
    %v465 = vmul.f32 %v464, %v445
    %v466 = vmul.f32 %v464, %v446
    %v467 = vadd.f32 %v411, %v465
    %v468 = vadd.f32 %v412, %v466
    %s469 = sld [smem:[#allocation3 + $0xc]]
    %v470 = vstv %s469
    %v471 = vmul.f32 %v470, %v447
    %v472 = vmul.f32 %v470, %v448
    %v473 = vadd.f32 %v455, %v471
    %v474 = vadd.f32 %v456, %v472
    %s475 = sld [smem:[#allocation3 + $0x27]]
    %v476 = vstv %s475
    %v477 = vmul.f32 %v476, %v447
    %v478 = vmul.f32 %v476, %v448
    %v479 = vadd.f32 %v461, %v477
    %v480 = vadd.f32 %v462, %v478
    %s481 = sld [smem:[#allocation3 + $0x42]]
    %v482 = vstv %s481
    %v483 = vmul.f32 %v482, %v447
    %v484 = vmul.f32 %v482, %v448
    %v485 = vadd.f32 %v467, %v483
    %v486 = vadd.f32 %v468, %v484
    %s487 = sld [smem:[#allocation3 + $0x15]]
    %v488 = vstv %s487
    %v489 = vmul.f32 %v488, %v449
    %v490 = vmul.f32 %v488, %v450
    %v491 = vadd.f32 %v473, %v489
    %v492 = vadd.f32 %v474, %v490
    %s493 = sld [smem:[#allocation3 + $0x30]]
    %v494 = vstv %s493
    %v495 = vmul.f32 %v494, %v449
    %v496 = vmul.f32 %v494, %v450
    %v497 = vadd.f32 %v479, %v495
    %v498 = vadd.f32 %v480, %v496
    %s499 = sld [smem:[#allocation3 + $0x4b]]
    %v500 = vstv %s499
    %v501 = vmul.f32 %v500, %v449
    %v502 = vmul.f32 %v500, %v450
    %v503 = vadd.f32 %v485, %v501
    %v504 = vadd.f32 %v486, %v502
    %s505 = sld [smem:[#allocation3 + $0x4]]
    %v506 = vstv %s505
    %v507 = vmul.f32 %v506, %v124
    %v508 = vmul.f32 %v506, %v125
    %v509 = vadd.f32 %v491, %v507
    %v510 = vadd.f32 %v492, %v508
    %s511 = sld [smem:[#allocation3 + $0x1f]]
    %v512 = vstv %s511
    %v513 = vmul.f32 %v512, %v124
    %v514 = vmul.f32 %v512, %v125
    %v515 = vadd.f32 %v497, %v513
    %v516 = vadd.f32 %v498, %v514
    %s517 = sld [smem:[#allocation3 + $0x3a]]
    %v518 = vstv %s517
    %v519 = vmul.f32 %v518, %v124
    %v520 = vmul.f32 %v518, %v125
    %v521 = vadd.f32 %v503, %v519
    %v522 = vadd.f32 %v504, %v520
    %s523 = sld [smem:[#allocation3 + $0xd]]
    %v524 = vstv %s523
    %v525 = vmul.f32 %v524, %v126
    %v526 = vmul.f32 %v524, %v127
    %v527 = vadd.f32 %v509, %v525
    %v528 = vadd.f32 %v510, %v526
    %s529 = sld [smem:[#allocation3 + $0x28]]
    %v530 = vstv %s529
    %v531 = vmul.f32 %v530, %v126
    %v532 = vmul.f32 %v530, %v127
    %v533 = vadd.f32 %v515, %v531
    %v534 = vadd.f32 %v516, %v532
    %s535 = sld [smem:[#allocation3 + $0x43]]
    %v536 = vstv %s535
    %v537 = vmul.f32 %v536, %v126
    %v538 = vmul.f32 %v536, %v127
    %v539 = vadd.f32 %v521, %v537
    %v540 = vadd.f32 %v522, %v538
    %s541 = sld [smem:[#allocation3 + $0x16]]
    %v542 = vstv %s541
    %v543 = vmul.f32 %v542, %v128
    %v544 = vmul.f32 %v542, %v129
    %v545 = vadd.f32 %v527, %v543
    %v546 = vadd.f32 %v528, %v544
    %s547 = sld [smem:[#allocation3 + $0x31]]
    %v548 = vstv %s547
    %v549 = vmul.f32 %v548, %v128
    %v550 = vmul.f32 %v548, %v129
    %v551 = vadd.f32 %v533, %v549
    %v552 = vadd.f32 %v534, %v550
    %s553 = sld [smem:[#allocation3 + $0x4c]]
    %v554 = vstv %s553
    %v555 = vmul.f32 %v554, %v128
    %v556 = vmul.f32 %v554, %v129
    %v557 = vadd.f32 %v539, %v555
    %v558 = vadd.f32 %v540, %v556
    %559 = vrot.lane.b32.xlu0 %v124, 127
    %v560 = vpop.permute.xlu0 %559
    %561 = vrot.lane.b32.xlu0 %v126, 127
    %v562 = vpop.permute.xlu0 %561
    %563 = vrot.lane.b32.xlu0 %v128, 127
    %v564 = vpop.permute.xlu0 %563
    %565 = vrot.lane.b32.xlu0 %v125, 127
    %v566 = vpop.permute.xlu0 %565
    %567 = vrot.lane.b32.xlu0 %v127, 127
    %v568 = vpop.permute.xlu0 %567
    %569 = vrot.lane.b32.xlu0 %v129, 127
    %v570 = vpop.permute.xlu0 %569
    %vm571 = vcmp.lt.s32.totalorder %v149, 127
    %v572 = vsel %vm571, %v560, %v566
    %v573 = vsel %vm571, %v562, %v568
    %v574 = vsel %vm571, %v564, %v570
    %v575 = vsel %vm571, %v566, %v560
    %v576 = vsel %vm571, %v568, %v562
    %v577 = vsel %vm571, %v570, %v564
    %s578 = scalar_lea.vmem [#allocation12], 5
    %v579 = vld [vmem:[%s578] ss:$8 sm:$0x3]
    %v581 = vlaneseq
    %v582 = vshrl.u32 %v581, 7
    %v583 = vsub.s32 0, %v582
    %v584 = vrot.slane %v579, %v583
    %v585 = vlaneseq
    %v586 = vshrl.u32 %v585, 7
    %v587 = vsub.s32 1, %v586
    %v588 = vrot.slane %v579, %v587
    %v591 = vmul.f32 %v572, %v584
    %v592 = vmul.f32 %v575, %v588
    %v593 = vmul.f32 %v573, %v584
    %v594 = vmul.f32 %v576, %v588
    %v595 = vmul.f32 %v574, %v584
    %v596 = vmul.f32 %v577, %v588
    %s597 = sld [smem:[#allocation3 + $0x5]]
    %v598 = vstv %s597
    %v599 = vmul.f32 %v598, %v591
    %v600 = vmul.f32 %v598, %v592
    %v601 = vadd.f32 %v545, %v599
    %v602 = vadd.f32 %v546, %v600
    %s603 = sld [smem:[#allocation3 + $0x20]]
    %v604 = vstv %s603
    %v605 = vmul.f32 %v604, %v591
    %v606 = vmul.f32 %v604, %v592
    %v607 = vadd.f32 %v551, %v605
    %v608 = vadd.f32 %v552, %v606
    %s609 = sld [smem:[#allocation3 + $0x3b]]
    %v610 = vstv %s609
    %v611 = vmul.f32 %v610, %v591
    %v612 = vmul.f32 %v610, %v592
    %v613 = vadd.f32 %v557, %v611
    %v614 = vadd.f32 %v558, %v612
    %s615 = sld [smem:[#allocation3 + $0xe]]
    %v616 = vstv %s615
    %v617 = vmul.f32 %v616, %v593
    %v618 = vmul.f32 %v616, %v594
    %v619 = vadd.f32 %v601, %v617
    %v620 = vadd.f32 %v602, %v618
    %s621 = sld [smem:[#allocation3 + $0x29]]
    %v622 = vstv %s621
    %v623 = vmul.f32 %v622, %v593
    %v624 = vmul.f32 %v622, %v594
    %v625 = vadd.f32 %v607, %v623
    %v626 = vadd.f32 %v608, %v624
    %s627 = sld [smem:[#allocation3 + $0x44]]
    %v628 = vstv %s627
    %v629 = vmul.f32 %v628, %v593
    %v630 = vmul.f32 %v628, %v594
    %v631 = vadd.f32 %v613, %v629
    %v632 = vadd.f32 %v614, %v630
    %s633 = sld [smem:[#allocation3 + $0x17]]
    %v634 = vstv %s633
    %v635 = vmul.f32 %v634, %v595
    %v636 = vmul.f32 %v634, %v596
    %v637 = vadd.f32 %v619, %v635
    %v638 = vadd.f32 %v620, %v636
    %s639 = sld [smem:[#allocation3 + $0x32]]
    %v640 = vstv %s639
    %v641 = vmul.f32 %v640, %v595
    %v642 = vmul.f32 %v640, %v596
    %v643 = vadd.f32 %v625, %v641
    %v644 = vadd.f32 %v626, %v642
    %s645 = sld [smem:[#allocation3 + $0x4d]]
    %v646 = vstv %s645
    %v647 = vmul.f32 %v646, %v595
    %v648 = vmul.f32 %v646, %v596
    %v649 = vadd.f32 %v631, %v647
    %v650 = vadd.f32 %v632, %v648
    %651 = vrot.lane.b32.xlu0 %v124, 113
    %v652 = vpop.permute.xlu0 %651
    %653 = vrot.lane.b32.xlu0 %v126, 113
    %v654 = vpop.permute.xlu0 %653
    %655 = vrot.lane.b32.xlu0 %v128, 113
    %v656 = vpop.permute.xlu0 %655
    %657 = vrot.lane.b32.xlu0 %v125, 113
    %v658 = vpop.permute.xlu0 %657
    %659 = vrot.lane.b32.xlu0 %v127, 113
    %v660 = vpop.permute.xlu0 %659
    %661 = vrot.lane.b32.xlu0 %v129, 113
    %v662 = vpop.permute.xlu0 %661
    %vm663 = vcmp.lt.s32.totalorder %v149, 113
    %v664 = vsel %vm663, %v652, %v658
    %v665 = vsel %vm663, %v654, %v660
    %v666 = vsel %vm663, %v656, %v662
    %v667 = vsel %vm663, %v658, %v652
    %v668 = vsel %vm663, %v660, %v654
    %v669 = vsel %vm663, %v662, %v656
    %s670 = scalar_lea.vmem [#allocation12], 6
    %v671 = vld [vmem:[%s670] ss:$8 sm:$0x3]
    %v673 = vlaneseq
    %v674 = vshrl.u32 %v673, 7
    %v675 = vsub.s32 0, %v674
    %v676 = vrot.slane %v671, %v675
    %v677 = vlaneseq
    %v678 = vshrl.u32 %v677, 7
    %v679 = vsub.s32 1, %v678
    %v680 = vrot.slane %v671, %v679
    %v683 = vmul.f32 %v664, %v676
    %v684 = vmul.f32 %v667, %v680
    %v685 = vmul.f32 %v665, %v676
    %v686 = vmul.f32 %v668, %v680
    %v687 = vmul.f32 %v666, %v676
    %v688 = vmul.f32 %v669, %v680
    %s689 = sld [smem:[#allocation3 + $0x6]]
    %v690 = vstv %s689
    %v691 = vmul.f32 %v690, %v683
    %v692 = vmul.f32 %v690, %v684
    %v693 = vadd.f32 %v637, %v691
    %v694 = vadd.f32 %v638, %v692
    %s695 = sld [smem:[#allocation3 + $0x21]]
    %v696 = vstv %s695
    %v697 = vmul.f32 %v696, %v683
    %v698 = vmul.f32 %v696, %v684
    %v699 = vadd.f32 %v643, %v697
    %v700 = vadd.f32 %v644, %v698
    %s701 = sld [smem:[#allocation3 + $0x3c]]
    %v702 = vstv %s701
    %v703 = vmul.f32 %v702, %v683
    %v704 = vmul.f32 %v702, %v684
    %v705 = vadd.f32 %v649, %v703
    %v706 = vadd.f32 %v650, %v704
    %s707 = sld [smem:[#allocation3 + $0xf]]
    %v708 = vstv %s707
    %v709 = vmul.f32 %v708, %v685
    %v710 = vmul.f32 %v708, %v686
    %v711 = vadd.f32 %v693, %v709
    %v712 = vadd.f32 %v694, %v710
    %s713 = sld [smem:[#allocation3 + $0x2a]]
    %v714 = vstv %s713
    %v715 = vmul.f32 %v714, %v685
    %v716 = vmul.f32 %v714, %v686
    %v717 = vadd.f32 %v699, %v715
    %v718 = vadd.f32 %v700, %v716
    %s719 = sld [smem:[#allocation3 + $0x45]]
    %v720 = vstv %s719
    %v721 = vmul.f32 %v720, %v685
    %v722 = vmul.f32 %v720, %v686
    %v723 = vadd.f32 %v705, %v721
    %v724 = vadd.f32 %v706, %v722
    %s725 = sld [smem:[#allocation3 + $0x18]]
    %v726 = vstv %s725
    %v727 = vmul.f32 %v726, %v687
    %v728 = vmul.f32 %v726, %v688
    %v729 = vadd.f32 %v711, %v727
    %v730 = vadd.f32 %v712, %v728
    %s731 = sld [smem:[#allocation3 + $0x33]]
    %v732 = vstv %s731
    %v733 = vmul.f32 %v732, %v687
    %v734 = vmul.f32 %v732, %v688
    %v735 = vadd.f32 %v717, %v733
    %v736 = vadd.f32 %v718, %v734
    %s737 = sld [smem:[#allocation3 + $0x4e]]
    %v738 = vstv %s737
    %v739 = vmul.f32 %v738, %v687
    %v740 = vmul.f32 %v738, %v688
    %v741 = vadd.f32 %v723, %v739
    %v742 = vadd.f32 %v724, %v740
    %743 = vrot.lane.b32.xlu0 %v124, 112
    %v744 = vpop.permute.xlu0 %743
    %745 = vrot.lane.b32.xlu0 %v126, 112
    %v746 = vpop.permute.xlu0 %745
    %747 = vrot.lane.b32.xlu0 %v128, 112
    %v748 = vpop.permute.xlu0 %747
    %749 = vrot.lane.b32.xlu0 %v125, 112
    %v750 = vpop.permute.xlu0 %749
    %751 = vrot.lane.b32.xlu0 %v127, 112
    %v752 = vpop.permute.xlu0 %751
    %753 = vrot.lane.b32.xlu0 %v129, 112
    %v754 = vpop.permute.xlu0 %753
    %vm755 = vcmp.lt.s32.totalorder %v149, 112
    %v756 = vsel %vm755, %v744, %v750
    %v757 = vsel %vm755, %v746, %v752
    %v758 = vsel %vm755, %v748, %v754
    %v759 = vsel %vm755, %v750, %v744
    %v760 = vsel %vm755, %v752, %v746
    %v761 = vsel %vm755, %v754, %v748
    %s762 = scalar_lea.vmem [#allocation12], 7
    %v763 = vld [vmem:[%s762] ss:$8 sm:$0x3]
    %v765 = vlaneseq
    %v766 = vshrl.u32 %v765, 7
    %v767 = vsub.s32 0, %v766
    %v768 = vrot.slane %v763, %v767
    %v769 = vlaneseq
    %v770 = vshrl.u32 %v769, 7
    %v771 = vsub.s32 1, %v770
    %v772 = vrot.slane %v763, %v771
    %v775 = vmul.f32 %v756, %v768
    %v776 = vmul.f32 %v759, %v772
    %v777 = vmul.f32 %v757, %v768
    %v778 = vmul.f32 %v760, %v772
    %v779 = vmul.f32 %v758, %v768
    %v780 = vmul.f32 %v761, %v772
    %s781 = sld [smem:[#allocation3 + $0x7]]
    %v782 = vstv %s781
    %v783 = vmul.f32 %v782, %v775
    %v784 = vmul.f32 %v782, %v776
    %v785 = vadd.f32 %v729, %v783
    %v786 = vadd.f32 %v730, %v784
    %s787 = sld [smem:[#allocation3 + $0x22]]
    %v788 = vstv %s787
    %v789 = vmul.f32 %v788, %v775
    %v790 = vmul.f32 %v788, %v776
    %v791 = vadd.f32 %v735, %v789
    %v792 = vadd.f32 %v736, %v790
    %s793 = sld [smem:[#allocation3 + $0x3d]]
    %v794 = vstv %s793
    %v795 = vmul.f32 %v794, %v775
    %v796 = vmul.f32 %v794, %v776
    %v797 = vadd.f32 %v741, %v795
    %v798 = vadd.f32 %v742, %v796
    %s799 = sld [smem:[#allocation3 + $0x10]]
    %v800 = vstv %s799
    %v801 = vmul.f32 %v800, %v777
    %v802 = vmul.f32 %v800, %v778
    %v803 = vadd.f32 %v785, %v801
    %v804 = vadd.f32 %v786, %v802
    %s805 = sld [smem:[#allocation3 + $0x2b]]
    %v806 = vstv %s805
    %v807 = vmul.f32 %v806, %v777
    %v808 = vmul.f32 %v806, %v778
    %v809 = vadd.f32 %v791, %v807
    %v810 = vadd.f32 %v792, %v808
    %s811 = sld [smem:[#allocation3 + $0x46]]
    %v812 = vstv %s811
    %v813 = vmul.f32 %v812, %v777
    %v814 = vmul.f32 %v812, %v778
    %v815 = vadd.f32 %v797, %v813
    %v816 = vadd.f32 %v798, %v814
    %s817 = sld [smem:[#allocation3 + $0x19]]
    %v818 = vstv %s817
    %v819 = vmul.f32 %v818, %v779
    %v820 = vmul.f32 %v818, %v780
    %v821 = vadd.f32 %v803, %v819
    %v822 = vadd.f32 %v804, %v820
    %s823 = sld [smem:[#allocation3 + $0x34]]
    %v824 = vstv %s823
    %v825 = vmul.f32 %v824, %v779
    %v826 = vmul.f32 %v824, %v780
    %v827 = vadd.f32 %v809, %v825
    %v828 = vadd.f32 %v810, %v826
    %s829 = sld [smem:[#allocation3 + $0x4f]]
    %v830 = vstv %s829
    %v831 = vmul.f32 %v830, %v779
    %v832 = vmul.f32 %v830, %v780
    %v833 = vadd.f32 %v815, %v831
    %v834 = vadd.f32 %v816, %v832
    %835 = vrot.lane.b32.xlu0 %v124, 111
    %v836 = vpop.permute.xlu0 %835
    %837 = vrot.lane.b32.xlu0 %v126, 111
    %v838 = vpop.permute.xlu0 %837
    %839 = vrot.lane.b32.xlu0 %v128, 111
    %v840 = vpop.permute.xlu0 %839
    %841 = vrot.lane.b32.xlu0 %v125, 111
    %v842 = vpop.permute.xlu0 %841
    %843 = vrot.lane.b32.xlu0 %v127, 111
    %v844 = vpop.permute.xlu0 %843
    %845 = vrot.lane.b32.xlu0 %v129, 111
    %v846 = vpop.permute.xlu0 %845
    %vm847 = vcmp.lt.s32.totalorder %v149, 111
    %v848 = vsel %vm847, %v836, %v842
    %v849 = vsel %vm847, %v838, %v844
    %v850 = vsel %vm847, %v840, %v846
    %v851 = vsel %vm847, %v842, %v836
    %v852 = vsel %vm847, %v844, %v838
    %v853 = vsel %vm847, %v846, %v840
    %s854 = scalar_lea.vmem [#allocation12], 16
    %v855 = vld [vmem:[%s854] ss:$8 sm:$0x3]
    %v857 = vlaneseq
    %v858 = vshrl.u32 %v857, 7
    %v859 = vsub.s32 0, %v858
    %v860 = vrot.slane %v855, %v859
    %v861 = vlaneseq
    %v862 = vshrl.u32 %v861, 7
    %v863 = vsub.s32 1, %v862
    %v864 = vrot.slane %v855, %v863
    %v867 = vmul.f32 %v848, %v860
    %v868 = vmul.f32 %v851, %v864
    %v869 = vmul.f32 %v849, %v860
    %v870 = vmul.f32 %v852, %v864
    %v871 = vmul.f32 %v850, %v860
    %v872 = vmul.f32 %v853, %v864
    %s873 = sld [smem:[#allocation3 + $0x8]]
    %v874 = vstv %s873
    %v875 = vmul.f32 %v874, %v867
    %v876 = vmul.f32 %v874, %v868
    %v877 = vadd.f32 %v821, %v875
    %v878 = vadd.f32 %v822, %v876
    %s879 = sld [smem:[#allocation3 + $0x23]]
    %v880 = vstv %s879
    %v881 = vmul.f32 %v880, %v867
    %v882 = vmul.f32 %v880, %v868
    %v883 = vadd.f32 %v827, %v881
    %v884 = vadd.f32 %v828, %v882
    %s885 = sld [smem:[#allocation3 + $0x3e]]
    %v886 = vstv %s885
    %v887 = vmul.f32 %v886, %v867
    %v888 = vmul.f32 %v886, %v868
    %v889 = vadd.f32 %v833, %v887
    %v890 = vadd.f32 %v834, %v888
    %s891 = sld [smem:[#allocation3 + $0x11]]
    %v892 = vstv %s891
    %v893 = vmul.f32 %v892, %v869
    %v894 = vmul.f32 %v892, %v870
    %v895 = vadd.f32 %v877, %v893
    %v896 = vadd.f32 %v878, %v894
    %s897 = sld [smem:[#allocation3 + $0x2c]]
    %v898 = vstv %s897
    %v899 = vmul.f32 %v898, %v869
    %v900 = vmul.f32 %v898, %v870
    %v901 = vadd.f32 %v883, %v899
    %v902 = vadd.f32 %v884, %v900
    %s903 = sld [smem:[#allocation3 + $0x47]]
    %v904 = vstv %s903
    %v905 = vmul.f32 %v904, %v869
    %v906 = vmul.f32 %v904, %v870
    %v907 = vadd.f32 %v889, %v905
    %v908 = vadd.f32 %v890, %v906
    %s909 = sld [smem:[#allocation3 + $0x1a]]
    %v910 = vstv %s909
    %v911 = vmul.f32 %v910, %v871
    %v912 = vmul.f32 %v910, %v872
    %v913 = vadd.f32 %v895, %v911
    %v914 = vadd.f32 %v896, %v912
    %s915 = sld [smem:[#allocation3 + $0x35]]
    %v916 = vstv %s915
    %v917 = vmul.f32 %v916, %v871
    %v918 = vmul.f32 %v916, %v872
    %v919 = vadd.f32 %v901, %v917
    %v920 = vadd.f32 %v902, %v918
    %s921 = sld [smem:[#allocation3 + $0x50]]
    %v922 = vstv %s921
    %v923 = vmul.f32 %v922, %v871
    %v924 = vmul.f32 %v922, %v872
    %v925 = vadd.f32 %v907, %v923
    %v926 = vadd.f32 %v908, %v924
    %v927 = vlaneseq
    %v928 = vshrl.u32 %v927, 7
    %v929 = vadd.s32 %v928, 8
    %v930 = vadd.s32 %v928, 16
    %vm931 = vcmp.lt.s32.totalorder %v928, 0
    %v932 = vsub.s32 0, %v928
    %v933 = vsel %vm931, %v932, %v928
    %v934 = vshrl.u32 %v933, 2
    %v935 = vand.u32 %v933, 3
    %v936 = vsub.s32 0, %v935
    %v937 = vsel %vm931, %v936, %v935
    %vm938 = vcmp.lt.s32.totalorder %v929, 0
    %v939 = vsub.s32 0, %v929
    %v940 = vsel %vm938, %v939, %v929
    %v941 = vshrl.u32 %v940, 2
    %v942 = vand.u32 %v940, 3
    %v943 = vsub.s32 0, %v942
    %v944 = vsel %vm938, %v943, %v942
    %vm945 = vcmp.lt.s32.totalorder %v930, 0
    %v946 = vsub.s32 0, %v930
    %v947 = vsel %vm945, %v946, %v930
    %v948 = vshrl.u32 %v947, 2
    %v949 = vand.u32 %v947, 3
    %v950 = vsub.s32 0, %v949
    %v951 = vsel %vm945, %v950, %v949
    %vm952 = vcmp.ne.s32.totalorder %v937, 0
    %vm953 = vcmp.ne.s32.totalorder %v944, 0
    %vm954 = vcmp.ne.s32.totalorder %v951, 0
    %vm955 = vcmp.lt.s32.totalorder %v937, 0
    %vm956 = vcmp.lt.s32.totalorder %v944, 0
    %vm957 = vcmp.lt.s32.totalorder %v951, 0
    %vm958 = vmand %vm955, %vm952
    %vm959 = vmand %vm956, %vm953
    %vm960 = vmand %vm957, %vm954
    %v961 = vadd.s32 %v937, 4
    %v962 = vadd.s32 %v944, 4
    %v963 = vadd.s32 %v951, 4
    %v964 = vsel %vm958, %v961, %v937
    %v965 = vsel %vm959, %v962, %v944
    %v966 = vsel %vm960, %v963, %v951
    %vm967 = vcmp.ne.s32.totalorder %v964, 0
    %vm968 = vcmp.ne.s32.totalorder %v965, 0
    %vm969 = vcmp.ne.s32.totalorder %v966, 0
    %v970 = vrot.slane %v913, 7
    %v971 = vrot.slane %v914, 7
    %v972 = vrot.slane %v919, 7
    %v973 = vrot.slane %v920, 7
    %v974 = vrot.slane %v925, 7
    %v975 = vrot.slane %v926, 7
    %vm976 = vcmp.lt.s32.totalorder %v928, 1
    %v977 = vsel %vm976, %v972, %v974
    %v978 = vsel %vm976, %v973, %v975
    %v979 = vsel %vm976, %v970, %v972
    %v980 = vsel %vm976, %v971, %v973
    %v981 = vsel %vm976, %v974, %v970
    %v982 = vsel %vm976, %v975, %v971
    %v983 = vsel %vm967, 1, 0
    %v984 = vsel %vm968, 1, 0
    %v985 = vsel %vm969, 1, 0
    %vm986 = vcmp.eq.s32.totalorder %v983, 1
    %vm987 = vcmp.eq.s32.totalorder %v984, 1
    %vm988 = vcmp.eq.s32.totalorder %v985, 1
    %v989 = vsel %vm986, %v981, 0.0
    %v990 = vsel %vm986, %v982, 0.0
    %v991 = vsel %vm987, %v979, 0.0
    %v992 = vsel %vm987, %v980, 0.0
    %v993 = vsel %vm988, %v977, 0.0
    %v994 = vsel %vm988, %v978, 0.0
    %vm995 = vcmp.ne.s32.totalorder %v964, 3
    %vm996 = vcmp.ne.s32.totalorder %v965, 3
    %vm997 = vcmp.ne.s32.totalorder %v966, 3
    %v998 = vrot.slane %v913, 1
    %v999 = vrot.slane %v914, 1
    %v1000 = vrot.slane %v919, 1
    %v1001 = vrot.slane %v920, 1
    %v1002 = vrot.slane %v925, 1
    %v1003 = vrot.slane %v926, 1
    %vm1004 = vcmp.lt.s32.totalorder %v928, 7
    %v1005 = vsel %vm1004, %v1000, %v1002
    %v1006 = vsel %vm1004, %v1001, %v1003
    %v1007 = vsel %vm1004, %v998, %v1000
    %v1008 = vsel %vm1004, %v999, %v1001
    %v1009 = vsel %vm1004, %v1002, %v998
    %v1010 = vsel %vm1004, %v1003, %v999
    %v1011 = vsel %vm995, 1, 0
    %v1012 = vsel %vm996, 1, 0
    %v1013 = vsel %vm997, 1, 0
    %vm1014 = vcmp.eq.s32.totalorder %v1011, 1
    %vm1015 = vcmp.eq.s32.totalorder %v1012, 1
    %vm1016 = vcmp.eq.s32.totalorder %v1013, 1
    %v1017 = vsel %vm1014, %v1007, 0.0
    %v1018 = vsel %vm1014, %v1008, 0.0
    %v1019 = vsel %vm1015, %v1005, 0.0
    %v1020 = vsel %vm1015, %v1006, 0.0
    %v1021 = vsel %vm1016, %v1009, 0.0
    %v1022 = vsel %vm1016, %v1010, 0.0
    %s1023 = sld [smem:[#allocation10]]
    %v1024 = vstv %s1023
    %s1025 = sld [smem:[#allocation10 + $0x1]]
    %v1026 = vstv %s1025
    %s1027 = sld [smem:[#allocation10 + $0x2]]
    %v1028 = vstv %s1027
    %s1029 = sld [smem:[#allocation9]]
    %v1030 = vstv %s1029
    %v1031 = vmul.f32 %v1030, %v989
    %v1032 = vmul.f32 %v1030, %v990
    %v1033 = vadd.f32 %v1024, %v1031
    %v1034 = vadd.f32 %v1024, %v1032
    %s1035 = sld [smem:[#allocation9 + $0x1]]
    %v1036 = vstv %s1035
    %v1037 = vmul.f32 %v1036, %v913
    %v1038 = vmul.f32 %v1036, %v914
    %v1039 = vadd.f32 %v1033, %v1037
    %v1040 = vadd.f32 %v1034, %v1038
    %s1041 = sld [smem:[#allocation9 + $0x2]]
    %v1042 = vstv %s1041
    %v1043 = vmul.f32 %v1042, %v1017
    %v1044 = vmul.f32 %v1042, %v1018
    %v1045 = vadd.f32 %v1039, %v1043
    %v1046 = vadd.f32 %v1040, %v1044
    %s1047 = sld [smem:[#allocation9 + $0x9]]
    %v1048 = vstv %s1047
    %v1049 = vmul.f32 %v1048, %v989
    %v1050 = vmul.f32 %v1048, %v990
    %v1051 = vadd.f32 %v1026, %v1049
    %v1052 = vadd.f32 %v1026, %v1050
    %s1053 = sld [smem:[#allocation9 + $0xa]]
    %v1054 = vstv %s1053
    %v1055 = vmul.f32 %v1054, %v913
    %v1056 = vmul.f32 %v1054, %v914
    %v1057 = vadd.f32 %v1051, %v1055
    %v1058 = vadd.f32 %v1052, %v1056
    %s1059 = sld [smem:[#allocation9 + $0xb]]
    %v1060 = vstv %s1059
    %v1061 = vmul.f32 %v1060, %v1017
    %v1062 = vmul.f32 %v1060, %v1018
    %v1063 = vadd.f32 %v1057, %v1061
    %v1064 = vadd.f32 %v1058, %v1062
    %s1065 = sld [smem:[#allocation9 + $0x12]]
    %v1066 = vstv %s1065
    %v1067 = vmul.f32 %v1066, %v989
    %v1068 = vmul.f32 %v1066, %v990
    %v1069 = vadd.f32 %v1028, %v1067
    %v1070 = vadd.f32 %v1028, %v1068
    %s1071 = sld [smem:[#allocation9 + $0x13]]
    %v1072 = vstv %s1071
    %v1073 = vmul.f32 %v1072, %v913
    %v1074 = vmul.f32 %v1072, %v914
    %v1075 = vadd.f32 %v1069, %v1073
    %v1076 = vadd.f32 %v1070, %v1074
    %s1077 = sld [smem:[#allocation9 + $0x14]]
    %v1078 = vstv %s1077
    %v1079 = vmul.f32 %v1078, %v1017
    %v1080 = vmul.f32 %v1078, %v1018
    %v1081 = vadd.f32 %v1075, %v1079
    %v1082 = vadd.f32 %v1076, %v1080
    %s1083 = sld [smem:[#allocation9 + $0x3]]
    %v1084 = vstv %s1083
    %v1085 = vmul.f32 %v1084, %v991
    %v1086 = vmul.f32 %v1084, %v992
    %v1087 = vadd.f32 %v1045, %v1085
    %v1088 = vadd.f32 %v1046, %v1086
    %s1089 = sld [smem:[#allocation9 + $0x4]]
    %v1090 = vstv %s1089
    %v1091 = vmul.f32 %v1090, %v919
    %v1092 = vmul.f32 %v1090, %v920
    %v1093 = vadd.f32 %v1087, %v1091
    %v1094 = vadd.f32 %v1088, %v1092
    %s1095 = sld [smem:[#allocation9 + $0x5]]
    %v1096 = vstv %s1095
    %v1097 = vmul.f32 %v1096, %v1019
    %v1098 = vmul.f32 %v1096, %v1020
    %v1099 = vadd.f32 %v1093, %v1097
    %v1100 = vadd.f32 %v1094, %v1098
    %s1101 = sld [smem:[#allocation9 + $0xc]]
    %v1102 = vstv %s1101
    %v1103 = vmul.f32 %v1102, %v991
    %v1104 = vmul.f32 %v1102, %v992
    %v1105 = vadd.f32 %v1063, %v1103
    %v1106 = vadd.f32 %v1064, %v1104
    %s1107 = sld [smem:[#allocation9 + $0xd]]
    %v1108 = vstv %s1107
    %v1109 = vmul.f32 %v1108, %v919
    %v1110 = vmul.f32 %v1108, %v920
    %v1111 = vadd.f32 %v1105, %v1109
    %v1112 = vadd.f32 %v1106, %v1110
    %s1113 = sld [smem:[#allocation9 + $0xe]]
    %v1114 = vstv %s1113
    %v1115 = vmul.f32 %v1114, %v1019
    %v1116 = vmul.f32 %v1114, %v1020
    %v1117 = vadd.f32 %v1111, %v1115
    %v1118 = vadd.f32 %v1112, %v1116
    %s1119 = sld [smem:[#allocation9 + $0x15]]
    %v1120 = vstv %s1119
    %v1121 = vmul.f32 %v1120, %v991
    %v1122 = vmul.f32 %v1120, %v992
    %v1123 = vadd.f32 %v1081, %v1121
    %v1124 = vadd.f32 %v1082, %v1122
    %s1125 = sld [smem:[#allocation9 + $0x16]]
    %v1126 = vstv %s1125
    %v1127 = vmul.f32 %v1126, %v919
    %v1128 = vmul.f32 %v1126, %v920
    %v1129 = vadd.f32 %v1123, %v1127
    %v1130 = vadd.f32 %v1124, %v1128
    %s1131 = sld [smem:[#allocation9 + $0x17]]
    %v1132 = vstv %s1131
    %v1133 = vmul.f32 %v1132, %v1019
    %v1134 = vmul.f32 %v1132, %v1020
    %v1135 = vadd.f32 %v1129, %v1133
    %v1136 = vadd.f32 %v1130, %v1134
    %s1137 = sld [smem:[#allocation9 + $0x6]]
    %v1138 = vstv %s1137
    %v1139 = vmul.f32 %v1138, %v993
    %v1140 = vmul.f32 %v1138, %v994
    %v1141 = vadd.f32 %v1099, %v1139
    %v1142 = vadd.f32 %v1100, %v1140
    %s1143 = sld [smem:[#allocation9 + $0x7]]
    %v1144 = vstv %s1143
    %v1145 = vmul.f32 %v1144, %v925
    %v1146 = vmul.f32 %v1144, %v926
    %v1147 = vadd.f32 %v1141, %v1145
    %v1148 = vadd.f32 %v1142, %v1146
    %s1149 = sld [smem:[#allocation9 + $0x8]]
    %v1150 = vstv %s1149
    %v1151 = vmul.f32 %v1150, %v1021
    %v1152 = vmul.f32 %v1150, %v1022
    %v1153 = vadd.f32 %v1147, %v1151
    %v1154 = vadd.f32 %v1148, %v1152
    %s1155 = sld [smem:[#allocation9 + $0xf]]
    %v1156 = vstv %s1155
    %v1157 = vmul.f32 %v1156, %v993
    %v1158 = vmul.f32 %v1156, %v994
    %v1159 = vadd.f32 %v1117, %v1157
    %v1160 = vadd.f32 %v1118, %v1158
    %s1161 = sld [smem:[#allocation9 + $0x10]]
    %v1162 = vstv %s1161
    %v1163 = vmul.f32 %v1162, %v925
    %v1164 = vmul.f32 %v1162, %v926
    %v1165 = vadd.f32 %v1159, %v1163
    %v1166 = vadd.f32 %v1160, %v1164
    %s1167 = sld [smem:[#allocation9 + $0x11]]
    %v1168 = vstv %s1167
    %v1169 = vmul.f32 %v1168, %v1021
    %v1170 = vmul.f32 %v1168, %v1022
    %v1171 = vadd.f32 %v1165, %v1169
    %v1172 = vadd.f32 %v1166, %v1170
    %s1173 = sld [smem:[#allocation9 + $0x18]]
    %v1174 = vstv %s1173
    %v1175 = vmul.f32 %v1174, %v993
    %v1176 = vmul.f32 %v1174, %v994
    %v1177 = vadd.f32 %v1135, %v1175
    %v1178 = vadd.f32 %v1136, %v1176
    %s1179 = sld [smem:[#allocation9 + $0x19]]
    %v1180 = vstv %s1179
    %v1181 = vmul.f32 %v1180, %v925
    %v1182 = vmul.f32 %v1180, %v926
    %v1183 = vadd.f32 %v1177, %v1181
    %v1184 = vadd.f32 %v1178, %v1182
    %s1185 = sld [smem:[#allocation9 + $0x1a]]
    %v1186 = vstv %s1185
    %v1187 = vmul.f32 %v1186, %v1021
    %v1188 = vmul.f32 %v1186, %v1022
    %v1189 = vadd.f32 %v1183, %v1187
    %v1190 = vadd.f32 %v1184, %v1188
    %1191 = vst [vmem:[#allocation15] sm:$0xff] %v1153
    %1192 = vst [vmem:[#allocation15 + $0x8] sm:$0xff] %v1154
    %1193 = vst [vmem:[#allocation15 + $0x10] sm:$0xff] %v1171
    %1194 = vst [vmem:[#allocation15 + $0x18] sm:$0xff] %v1172
    %1195 = vst [vmem:[#allocation15 + $0x20] sm:$0xff] %v1189
    %1196 = vst [vmem:[#allocation15 + $0x28] sm:$0xff] %v1190
    // Predicated region
    $region54: #{tpu_custom_call.1} parent=1 // pred_check
      _
    $region55: #{tpu_custom_call.1} parent=1 // pred_check_branch
      %1198 = sbr.rel (0) target = $region57
    $region56: #{tpu_custom_call.1} parent=1 // pred_region
      %s1200 = ssub.s32 768, 768
      %1201 = vsyncadd [#allocation5], %s1200
      %s1202 = sshll.u32 [#allocation15], 4
      %s1203 = int_to_ptr.vmem [resolvable:$true] %s1202
      %1208 = dma.vmem_to_hbm [thread:$0]  %s1203, 768, %s7, [#allocation5], 256, 256, 16
    $region57: #{tpu_custom_call.1} parent=1 // pred_fallthru
      _
    // Predicated region
    $region58: #{tpu_custom_call.1} parent=1 // pred_check
      _
    $region59: #{tpu_custom_call.1} parent=1 // pred_check_branch
      %1210 = sbr.rel (0) target = $region61
    $region60: #{tpu_custom_call.1} parent=1 // pred_region
      %1211 = dma.done [#allocation5], 768
    $region61: #{tpu_custom_call.1} parent=1 // pred_fallthru
      _
    %1212 = vsyncpa [#allocation4], 1
    %1213 = vsyncpa [#allocation14], 1
    %1214 = vsyncpa [#allocation5], 1
    %1215 = vsyncpa [#allocation6], 1
    %1216 = vsyncpa [#allocation8], 1
    %1217 = vsyncpa [#allocation11], 1

</llo_original>
